<compile_context>
chip_gen: v7x
topology: tpu7x:2x2x1
jax: 0.10.0
libtpu: 0.0.40
codegen_flags: <defaults>
</compile_context>

<pallas_src>
import functools
from typing import NamedTuple

import numpy as np
import jax
import jax.numpy as jnp
from jax import lax
from jax.experimental import pallas as pl
from jax.experimental.pallas import tpu as pltpu


class _Dims(NamedTuple):
    bb: int     # batch elements per grid step (lane packing factor)
    wo1: int
    wo2: int
    ho2: int
    cout2: int
    r1: int     # cout1 * ho1
    r2: int     # cout2 * ho2
    r2p: int    # r2 rounded up to a multiple of 8


# --------------------------------------------------------------------------- #
# Pallas kernel: fully fused forward pass for one batch block (BB elements).
# --------------------------------------------------------------------------- #
def _fused_kernel(x_ref, l1_ref, s1_ref, b1_ref, l2_ref, s2_ref, b2_ref, o_ref,
                  *, r1, r2p):
    f32 = jnp.float32
    x = x_ref[...]                                              # (C*H, BB*W)

    # ---- conv1 (3x3, stride 2) + bias/pad map + ReLU ------------------------
    z1 = jnp.dot(l1_ref[...], x, preferred_element_type=f32)    # (3*r1, BB*W)
    acc1 = b1_ref[...]                                          # pad value + bias
    for dj in range(3):                                         # aligned slices (r1 % 8 == 0)
        acc1 = acc1 + jnp.dot(z1[dj * r1:(dj + 1) * r1, :], s1_ref[dj],
                              preferred_element_type=f32)
    h1 = jnp.maximum(acc1, 0.0)                                 # (r1, BB*Wo1)

    # ---- conv2 (3x3, stride 1, 'same') + bias/pad map + sigmoid -------------
    z2 = jnp.dot(l2_ref[...], h1, preferred_element_type=f32)   # (3*r2p, BB*Wo1)
    acc2 = b2_ref[...]
    for dj in range(3):                                         # aligned slices (r2p % 8 == 0)
        acc2 = acc2 + jnp.dot(z2[dj * r2p:(dj + 1) * r2p, :], s2_ref[dj],
                              preferred_element_type=f32)
    # sigmoid(z) = 0.5 * (tanh(z/2) + 1): stable, runs on the EUP slot.
    o_ref[0] = (0.5 * (jnp.tanh(0.5 * acc2) + 1.0)).astype(o_ref.dtype)


# --------------------------------------------------------------------------- #
# Jitted data path: lane-pack batch, one pallas_call, NCHW relayout at the end.
# --------------------------------------------------------------------------- #
@functools.partial(jax.jit, static_argnames=("dims",))
def _forward_jit(x, lcat1, s1, bias1, lcat2, s2, bias2, *, dims):
    n, c0, h, w = x.shape
    bb, wo1, wo2 = dims.bb, dims.wo1, dims.wo2
    r1, r2, r2p = dims.r1, dims.r2, dims.r2p
    g = max(1, -(-n // bb))
    npad = g * bb
    if npad != n:
        x = jnp.pad(x, ((0, npad - n), (0, 0), (0, 0), (0, 0)))
    # Lane-pack the batch: (N, C, H, W) -> (C*H, N*W).  Layout plumbing done in
    # the wrapper so the kernel sees lane-dense operands.
    x2d = x.astype(jnp.float32).transpose(1, 2, 0, 3).reshape(c0 * h, npad * w)
    k1 = c0 * h

    flops = g * (2 * (3 * r1) * k1 * (bb * w)
                 + 3 * 2 * r1 * (bb * w) * (bb * wo1)
                 + 2 * (3 * r2p) * r1 * (bb * wo1)
                 + 3 * 2 * r2p * (bb * wo1) * (bb * wo2))
    bytes_accessed = 4 * (x2d.size + g * r2p * bb * wo2 + lcat1.size + s1.size
                          + bias1.size + lcat2.size + s2.size + bias2.size)

    out = pl.pallas_call(
        functools.partial(_fused_kernel, r1=r1, r2p=r2p),
        out_shape=jax.ShapeDtypeStruct((g, r2p, bb * wo2), jnp.float32),
        grid_spec=pltpu.PrefetchScalarGridSpec(
            num_scalar_prefetch=0,
            grid=(g,),
            in_specs=[
                pl.BlockSpec((k1, bb * w), lambda i: (0, i)),              # x block
                pl.BlockSpec((3 * r1, k1), lambda i: (0, 0)),              # Lcat1 (resident)
                pl.BlockSpec((3, bb * w, bb * wo1), lambda i: (0, 0, 0)),  # Sel1 (resident)
                pl.BlockSpec((r1, bb * wo1), lambda i: (0, 0)),            # bias/pad map 1
                pl.BlockSpec((3 * r2p, r1), lambda i: (0, 0)),             # Lcat2 (resident)
                pl.BlockSpec((3, bb * wo1, bb * wo2), lambda i: (0, 0, 0)),# Sel2 (resident)
                pl.BlockSpec((r2p, bb * wo2), lambda i: (0, 0)),           # bias/pad map 2
            ],
            out_specs=pl.BlockSpec((1, r2p, bb * wo2), lambda i: (i, 0, 0)),
        ),
        compiler_params=pltpu.CompilerParams(
            dimension_semantics=("parallel",),
            vmem_limit_bytes=32 * 1024 * 1024,
        ),
        cost_estimate=pl.CostEstimate(flops=int(flops),
                                      transcendentals=int(g * r2p * bb * wo2),
                                      bytes_accessed=int(bytes_accessed)),
    )(x2d, lcat1, s1, bias1, lcat2, s2, bias2)

    # (G, r2p, BB*Wo2) -> NCHW; tiny tensor, single wrapper-side relayout.
    out = out[:, :r2, :].reshape(g, dims.cout2, dims.ho2, bb, wo2)
    out = out.transpose(0, 3, 1, 2, 4).reshape(npad, dims.cout2, dims.ho2, wo2)
    return out[:n]


# --------------------------------------------------------------------------- #
# Module equivalent
# --------------------------------------------------------------------------- #
class ConstantPadNDPallas:
    """JAX/Pallas equivalent of the reference ConstantPadND torch module."""

    def __init__(self, pad, value=None, key=None, batch_block=16):
        if key is None:
            key = jax.random.PRNGKey(0)
        self.dim = len(pad) // 2
        self.value = 0.0 if value is None else float(value)
        self.batch_block = int(batch_block)
        # TODO(synk): only the len(pad)==8 (conv2d) branch of the torch module is implemented.
        assert self.dim == 4, "this implementation exercises the conv2d branch (len(pad) == 8)"

        in_ch1 = 1 + pad[-3] + pad[-4]
        in_ch2 = 3 + pad[-3] + pad[-4]
        k1, k2, k3, k4 = jax.random.split(key, 4)
        bound1 = 1.0 / float(np.sqrt(in_ch1 * 9))
        bound2 = 1.0 / float(np.sqrt(in_ch2 * 9))
        self.w1 = jax.random.uniform(k1, (3, in_ch1, 3, 3), jnp.float32, -bound1, bound1)
        self.b1 = jax.random.uniform(k2, (3,), jnp.float32, -bound1, bound1)
        self.w2 = jax.random.uniform(k3, (3, in_ch2, 3, 3), jnp.float32, -bound2, bound2)
        self.b2 = jax.random.uniform(k4, (3,), jnp.float32, -bound2, bound2)

        # Truncate pad at the first all-zero pair, exactly like the torch module.
        nonzero_idx = len(pad)
        for i in range(0, len(pad), 2):
            if pad[i] + pad[i + 1] == 0:
                nonzero_idx = i
                break
        self.pad = tuple(pad[:nonzero_idx])
        self._op_cache = {}

    def _pad_pairs(self):
        def pair(i):
            return ((self.pad[2 * i], self.pad[2 * i + 1])
                    if 2 * i + 1 < len(self.pad) else (0, 0))
        return pair(0), pair(1), pair(2), pair(3)

    # Build the (static, per-geometry) matmul operands and pad/bias maps once.
    def _operands(self, c0, h, w):
        key = (c0, h, w, self.batch_block)
        if key in self._op_cache:
            return self._op_cache[key]
        (pwl, pwr), (phl, phr), (pcl, pcr), _ = self._pad_pairs()
        bb = self.batch_block
        w1, b1, w2, b2 = self.w1, self.b1, self.w2, self.b2
        cout1, cin1, kh1, kw1 = w1.shape
        cout2, cin2, kh2, kw2 = w2.shape
        assert (kh1, kw1) == (3, 3) and (kh2, kw2) == (3, 3), "geometry assumes 3x3 convs"

        cp1, hp1, wp1 = c0 + pcl + pcr, h + phl + phr, w + pwl + pwr
        assert cp1 == cin1, "padded channel count must match conv2d weights"
        ho1, wo1 = (hp1 - 3) // 2 + 1, (wp1 - 3) // 2 + 1              # stride (2, 2)
        cp2 = cout1 + pcl + pcr
        assert cp2 == cin2, "padded channel count must match conv2d_1 weights"
        hp2, wp2 = ho1 + phl + phr + 2, wo1 + pwl + pwr + 2            # +2: 'same' zero ring
        ho2, wo2 = hp2 - 2, wp2 - 2
        r1, r2 = cout1 * ho1, cout2 * ho2
        r2p = ((r2 + 7) // 8) * 8
        k1 = c0 * h
        dn = ("NCHW", "OIHW", "NCHW")
        f32 = jnp.float32
        eye = np.eye(bb, dtype=np.float32)

        # ---- conv1 operands -------------------------------------------------
        # H-selection folded with weights: L1[dj, o*Ho1+ho, c*H+hh]
        selh1 = np.zeros((3, ho1, h), np.float32)
        for di in range(3):
            for ho in range(ho1):
                hh = 2 * ho + di - phl
                if 0 <= hh < h:
                    selh1[di, ho, hh] = 1.0
        l1 = jnp.einsum("ocij,iph->jopch", w1[:, pcl:pcl + c0], jnp.asarray(selh1))
        lcat1 = l1.reshape(3 * r1, k1).astype(f32)
        # W-selection (stride 2), block-diagonal over the lane-packed batch.
        selw1 = np.zeros((3, w, wo1), np.float32)
        for dj in range(3):
            for wo in range(wo1):
                ww = 2 * wo + dj - pwl
                if 0 <= ww < w:
                    selw1[dj, ww, wo] = 1.0
        s1 = jnp.asarray(np.stack([np.kron(eye, selw1[dj]) for dj in range(3)]))
        # Constant-pad contribution folded into a per-output bias map.
        bg1 = np.full((1, cp1, hp1, wp1), self.value, np.float32)
        bg1[0, pcl:pcl + c0, phl:phl + h, pwl:pwl + w] = 0.0
        bias1 = lax.conv_general_dilated(jnp.asarray(bg1), w1, (2, 2), "VALID",
                                         dimension_numbers=dn)[0]
        bias1 = (bias1 + b1[:, None, None]).reshape(r1, wo1)
        bias1 = jnp.tile(bias1, (1, bb)).astype(f32)                   # (r1, bb*wo1)

        # ---- conv2 operands -------------------------------------------------
        selh2 = np.zeros((3, ho2, ho1), np.float32)
        for di in range(3):
            for ho in range(ho2):
                hh = ho + di - 1 - phl
                if 0 <= hh < ho1:
                    selh2[di, ho, hh] = 1.0
        l2 = jnp.einsum("ocij,iph->jopch", w2[:, pcl:pcl + cout1], jnp.asarray(selh2))
        l2 = l2.reshape(3, r2, r1)
        if r2p > r2:                                                   # row-pad for alignment
            l2 = jnp.concatenate([l2, jnp.zeros((3, r2p - r2, r1), f32)], axis=1)
        lcat2 = l2.reshape(3 * r2p, r1).astype(f32)
        selw2 = np.zeros((3, wo1, wo2), np.float32)
        for dj in range(3):
            for wo in range(wo2):
                ww = wo + dj - 1 - pwl
                if 0 <= ww < wo1:
                    selw2[dj, ww, wo] = 1.0
        s2 = jnp.asarray(np.stack([np.kron(eye, selw2[dj]) for dj in range(3)]))
        bg2 = np.zeros((1, cp2, hp2, wp2), np.float32)
        bg2[0, :, 1:hp2 - 1, 1:wp2 - 1] = self.value
        bg2[0, pcl:pcl + cout1, 1 + phl:1 + phl + ho1, 1 + pwl:1 + pwl + wo1] = 0.0
        bias2 = lax.conv_general_dilated(jnp.asarray(bg2), w2, (1, 1), "VALID",
                                         dimension_numbers=dn)[0]
        bias2 = (bias2 + b2[:, None, None]).reshape(r2, wo2)
        bias2 = jnp.tile(bias2, (1, bb))
        if r2p > r2:
            bias2 = jnp.concatenate([bias2, jnp.zeros((r2p - r2, bb * wo2), f32)], axis=0)
        bias2 = bias2.astype(f32)

        dims = _Dims(bb=bb, wo1=wo1, wo2=wo2, ho2=ho2, cout2=cout2,
                     r1=r1, r2=r2, r2p=r2p)
        ops = (lcat1, s1, bias1, lcat2, s2, bias2)
        self._op_cache[key] = (ops, dims)
        return ops, dims

    def __call__(self, x):
        (_, _), (_, _), (_, _), (pnl, pnr) = self._pad_pairs()
        if pnl or pnr:   # batch padding (normally truncated) stays in JAX glue
            x = jnp.pad(x, ((pnl, pnr), (0, 0), (0, 0), (0, 0)),
                        constant_values=self.value)
        n, c0, h, w = x.shape
        ops, dims = self._operands(c0, h, w)
        return _forward_jit(x, *ops, dims=dims)


# --------------------------------------------------------------------------- #
# Pure-JAX reference (for the correctness check)
# --------------------------------------------------------------------------- #
def _constant_pad_nd(x, pad, value):
    pw = [(0, 0)] * x.ndim
    for i in range(len(pad) // 2):
        ax = x.ndim - 1 - i
        pw[ax] = (pad[2 * i], pad[2 * i + 1])
    return jnp.pad(x, pw, mode="constant", constant_values=value)


def _ref_forward(mod, x):
    dn = ("NCHW", "OIHW", "NCHW")
    x = _constant_pad_nd(x, mod.pad, mod.value)
    x = lax.conv_general_dilated(x, mod.w1, (2, 2), "VALID", dimension_numbers=dn)
    x = jnp.maximum(x + mod.b1[None, :, None, None], 0.0)
    x = _constant_pad_nd(x, mod.pad, mod.value)
    x = lax.conv_general_dilated(x, mod.w2, (1, 1), "SAME", dimension_numbers=dn)
    x = x + mod.b2[None, :, None, None]
    return jax.nn.sigmoid(x)


if __name__ == "__main__":
    # F.pad order: (W_l, W_r, H_l, H_r, C_l, C_r, N_l, N_r); the batch pair is
    # zero, so the module truncates it -> effective pad = (1, 1, 1, 1, 1, 1).
    pad = (1, 1, 1, 1, 1, 1, 0, 0)
    value = 0.5

    mod = ConstantPadNDPallas(pad, value)
    # Batch 32 -> 2 lane-packed grid steps of 16 (>=128 lanes per matmul/store,
    # and both v7x TensorCores get a step).
    x = jax.random.normal(jax.random.PRNGKey(0), (32, 1, 16, 16), jnp.float32)

    out = jax.block_until_ready(mod(x))
    assert out.shape == (32, 3, 10, 10), out.shape

    ref = jax.block_until_ready(_ref_forward(mod, x))
    np.testing.assert_allclose(np.asarray(out), np.asarray(ref), rtol=1e-4, atol=1e-4)

    print("KERNEL_OK")
</pallas_src>

<mosaic_0001>
module attributes {stable_mosaic.version = 11 : i64} {
  func.func @_fused_kernel(%arg0: i32, %arg1: memref<16x256xf32, #tpu.memory_space<vmem>>, %arg2: memref<72x16xf32, #tpu.memory_space<vmem>>, %arg3: memref<3x256x128xf32, #tpu.memory_space<vmem>>, %arg4: memref<24x128xf32, #tpu.memory_space<vmem>>, %arg5: memref<96x24xf32, #tpu.memory_space<vmem>>, %arg6: memref<3x128x160xf32, #tpu.memory_space<vmem>>, %arg7: memref<32x160xf32, #tpu.memory_space<vmem>>, %arg8: memref<1x32x160xf32, #tpu.memory_space<vmem>>) attributes {dimension_semantics = [#tpu.dimension_semantics<parallel>], iteration_bounds = array<i64: 2>, scalar_prefetch = 0 : i64, scratch_operands = 0 : i64, tpu.core_type = #tpu.core_type<tc>, window_params = [{transform_indices = @transform_0, window_bounds = array<i64: 16, 256>}, {pipeline_mode = #tpu.pipeline_mode<synchronous>, transform_indices = @transform_1, window_bounds = array<i64: 72, 16>}, {pipeline_mode = #tpu.pipeline_mode<synchronous>, transform_indices = @transform_2, window_bounds = array<i64: 3, 256, 128>}, {pipeline_mode = #tpu.pipeline_mode<synchronous>, transform_indices = @transform_3, window_bounds = array<i64: 24, 128>}, {pipeline_mode = #tpu.pipeline_mode<synchronous>, transform_indices = @transform_4, window_bounds = array<i64: 96, 24>}, {pipeline_mode = #tpu.pipeline_mode<synchronous>, transform_indices = @transform_5, window_bounds = array<i64: 3, 128, 160>}, {pipeline_mode = #tpu.pipeline_mode<synchronous>, transform_indices = @transform_6, window_bounds = array<i64: 32, 160>}, {transform_indices = @transform_7, window_bounds = array<i64: 1, 32, 160>}]} {
    %c0 = arith.constant 0 : index
    %c0_0 = arith.constant 0 : index
    %0 = vector.load %arg1[%c0, %c0_0] : memref<16x256xf32, #tpu.memory_space<vmem>>, vector<16x256xf32>
    %c0_1 = arith.constant 0 : index
    %c0_2 = arith.constant 0 : index
    %1 = vector.load %arg2[%c0_1, %c0_2] : memref<72x16xf32, #tpu.memory_space<vmem>>, vector<72x16xf32>
    %cst = arith.constant dense<0.000000e+00> : vector<72x256xf32>
    %2 = tpu.matmul %1, %0, %cst {dimension_numbers = #tpu.dot_dimension_numbers<[1], [0], [0], [1], [0, 0, 1, 1], [], []>} : vector<72x16xf32>, vector<16x256xf32>, vector<72x256xf32> -> vector<72x256xf32>
    %c0_3 = arith.constant 0 : index
    %c0_4 = arith.constant 0 : index
    %3 = vector.load %arg4[%c0_3, %c0_4] : memref<24x128xf32, #tpu.memory_space<vmem>>, vector<24x128xf32>
    %4 = vector.extract_strided_slice %2 {offsets = [0, 0], sizes = [24, 256], strides = [1, 1]} : vector<72x256xf32> to vector<24x256xf32>
    %c0_5 = arith.constant 0 : index
    %c0_6 = arith.constant 0 : index
    %c0_7 = arith.constant 0 : index
    %5 = vector.load %arg3[%c0_5, %c0_6, %c0_7] : memref<3x256x128xf32, #tpu.memory_space<vmem>>, vector<1x256x128xf32>
    %6 = vector.shape_cast %5 : vector<1x256x128xf32> to vector<256x128xf32>
    %cst_8 = arith.constant dense<0.000000e+00> : vector<24x128xf32>
    %7 = tpu.matmul %4, %6, %cst_8 {dimension_numbers = #tpu.dot_dimension_numbers<[1], [0], [0], [1], [0, 0, 1, 1], [], []>} : vector<24x256xf32>, vector<256x128xf32>, vector<24x128xf32> -> vector<24x128xf32>
    %8 = arith.addf %3, %7 : vector<24x128xf32>
    %9 = vector.extract_strided_slice %2 {offsets = [24, 0], sizes = [24, 256], strides = [1, 1]} : vector<72x256xf32> to vector<24x256xf32>
    %c1 = arith.constant 1 : index
    %c0_9 = arith.constant 0 : index
    %c0_10 = arith.constant 0 : index
    %10 = vector.load %arg3[%c1, %c0_9, %c0_10] : memref<3x256x128xf32, #tpu.memory_space<vmem>>, vector<1x256x128xf32>
    %11 = vector.shape_cast %10 : vector<1x256x128xf32> to vector<256x128xf32>
    %cst_11 = arith.constant dense<0.000000e+00> : vector<24x128xf32>
    %12 = tpu.matmul %9, %11, %cst_11 {dimension_numbers = #tpu.dot_dimension_numbers<[1], [0], [0], [1], [0, 0, 1, 1], [], []>} : vector<24x256xf32>, vector<256x128xf32>, vector<24x128xf32> -> vector<24x128xf32>
    %13 = arith.addf %8, %12 : vector<24x128xf32>
    %14 = vector.extract_strided_slice %2 {offsets = [48, 0], sizes = [24, 256], strides = [1, 1]} : vector<72x256xf32> to vector<24x256xf32>
    %c2 = arith.constant 2 : index
    %c0_12 = arith.constant 0 : index
    %c0_13 = arith.constant 0 : index
    %15 = vector.load %arg3[%c2, %c0_12, %c0_13] : memref<3x256x128xf32, #tpu.memory_space<vmem>>, vector<1x256x128xf32>
    %16 = vector.shape_cast %15 : vector<1x256x128xf32> to vector<256x128xf32>
    %cst_14 = arith.constant dense<0.000000e+00> : vector<24x128xf32>
    %17 = tpu.matmul %14, %16, %cst_14 {dimension_numbers = #tpu.dot_dimension_numbers<[1], [0], [0], [1], [0, 0, 1, 1], [], []>} : vector<24x256xf32>, vector<256x128xf32>, vector<24x128xf32> -> vector<24x128xf32>
    %18 = arith.addf %13, %17 : vector<24x128xf32>
    %cst_15 = arith.constant 0.000000e+00 : f32
    %19 = vector.broadcast %cst_15 : f32 to vector<24x128xf32>
    %20 = arith.maximumf %18, %19 : vector<24x128xf32>
    %c0_16 = arith.constant 0 : index
    %c0_17 = arith.constant 0 : index
    %21 = vector.load %arg5[%c0_16, %c0_17] : memref<96x24xf32, #tpu.memory_space<vmem>>, vector<96x24xf32>
    %cst_18 = arith.constant dense<0.000000e+00> : vector<96x128xf32>
    %22 = tpu.matmul %21, %20, %cst_18 {dimension_numbers = #tpu.dot_dimension_numbers<[1], [0], [0], [1], [0, 0, 1, 1], [], []>} : vector<96x24xf32>, vector<24x128xf32>, vector<96x128xf32> -> vector<96x128xf32>
    %c0_19 = arith.constant 0 : index
    %c0_20 = arith.constant 0 : index
    %23 = vector.load %arg7[%c0_19, %c0_20] : memref<32x160xf32, #tpu.memory_space<vmem>>, vector<32x160xf32>
    %24 = vector.extract_strided_slice %22 {offsets = [0, 0], sizes = [32, 128], strides = [1, 1]} : vector<96x128xf32> to vector<32x128xf32>
    %c0_21 = arith.constant 0 : index
    %c0_22 = arith.constant 0 : index
    %c0_23 = arith.constant 0 : index
    %25 = vector.load %arg6[%c0_21, %c0_22, %c0_23] : memref<3x128x160xf32, #tpu.memory_space<vmem>>, vector<1x128x160xf32>
    %26 = vector.shape_cast %25 : vector<1x128x160xf32> to vector<128x160xf32>
    %cst_24 = arith.constant dense<0.000000e+00> : vector<32x160xf32>
    %27 = tpu.matmul %24, %26, %cst_24 {dimension_numbers = #tpu.dot_dimension_numbers<[1], [0], [0], [1], [0, 0, 1, 1], [], []>} : vector<32x128xf32>, vector<128x160xf32>, vector<32x160xf32> -> vector<32x160xf32>
    %28 = arith.addf %23, %27 : vector<32x160xf32>
    %29 = vector.extract_strided_slice %22 {offsets = [32, 0], sizes = [32, 128], strides = [1, 1]} : vector<96x128xf32> to vector<32x128xf32>
    %c1_25 = arith.constant 1 : index
    %c0_26 = arith.constant 0 : index
    %c0_27 = arith.constant 0 : index
    %30 = vector.load %arg6[%c1_25, %c0_26, %c0_27] : memref<3x128x160xf32, #tpu.memory_space<vmem>>, vector<1x128x160xf32>
    %31 = vector.shape_cast %30 : vector<1x128x160xf32> to vector<128x160xf32>
    %cst_28 = arith.constant dense<0.000000e+00> : vector<32x160xf32>
    %32 = tpu.matmul %29, %31, %cst_28 {dimension_numbers = #tpu.dot_dimension_numbers<[1], [0], [0], [1], [0, 0, 1, 1], [], []>} : vector<32x128xf32>, vector<128x160xf32>, vector<32x160xf32> -> vector<32x160xf32>
    %33 = arith.addf %28, %32 : vector<32x160xf32>
    %34 = vector.extract_strided_slice %22 {offsets = [64, 0], sizes = [32, 128], strides = [1, 1]} : vector<96x128xf32> to vector<32x128xf32>
    %c2_29 = arith.constant 2 : index
    %c0_30 = arith.constant 0 : index
    %c0_31 = arith.constant 0 : index
    %35 = vector.load %arg6[%c2_29, %c0_30, %c0_31] : memref<3x128x160xf32, #tpu.memory_space<vmem>>, vector<1x128x160xf32>
    %36 = vector.shape_cast %35 : vector<1x128x160xf32> to vector<128x160xf32>
    %cst_32 = arith.constant dense<0.000000e+00> : vector<32x160xf32>
    %37 = tpu.matmul %34, %36, %cst_32 {dimension_numbers = #tpu.dot_dimension_numbers<[1], [0], [0], [1], [0, 0, 1, 1], [], []>} : vector<32x128xf32>, vector<128x160xf32>, vector<32x160xf32> -> vector<32x160xf32>
    %38 = arith.addf %33, %37 : vector<32x160xf32>
    %cst_33 = arith.constant 5.000000e-01 : f32
    %39 = vector.broadcast %cst_33 : f32 to vector<32x160xf32>
    %40 = arith.mulf %39, %38 : vector<32x160xf32>
    %41 = math.tanh %40 : vector<32x160xf32>
    %cst_34 = arith.constant 1.000000e+00 : f32
    %42 = vector.broadcast %cst_34 : f32 to vector<32x160xf32>
    %43 = arith.addf %41, %42 : vector<32x160xf32>
    %cst_35 = arith.constant 5.000000e-01 : f32
    %44 = vector.broadcast %cst_35 : f32 to vector<32x160xf32>
    %45 = arith.mulf %44, %43 : vector<32x160xf32>
    %c0_36 = arith.constant 0 : index
    %c0_37 = arith.constant 0 : index
    %c0_38 = arith.constant 0 : index
    %46 = vector.load %arg8[%c0_36, %c0_37, %c0_38] : memref<1x32x160xf32, #tpu.memory_space<vmem>>, vector<1x32x160xf32>
    %47 = vector.shape_cast %46 : vector<1x32x160xf32> to vector<32x160xf32>
    %48 = vector.shape_cast %45 : vector<32x160xf32> to vector<1x32x160xf32>
    tpu.vector_store %arg8[%c0_36, %c0_37, %c0_38], %48 {strides = array<i32>} : memref<1x32x160xf32, #tpu.memory_space<vmem>>, vector<1x32x160xf32>,
    return
  }
  func.func @transform_0(%arg0: i32) -> (i32, i32) {
    %c0_i32 = arith.constant 0 : i32
    %c0_i32_0 = arith.constant 0 : i32
    return %c0_i32, %arg0 : i32, i32
  }
  func.func @transform_1(%arg0: i32) -> (i32, i32) {
    %c0_i32 = arith.constant 0 : i32
    %c0_i32_0 = arith.constant 0 : i32
    %c0_i32_1 = arith.constant 0 : i32
    return %c0_i32, %c0_i32_0 : i32, i32
  }
  func.func @transform_2(%arg0: i32) -> (i32, i32, i32) {
    %c0_i32 = arith.constant 0 : i32
    %c0_i32_0 = arith.constant 0 : i32
    %c0_i32_1 = arith.constant 0 : i32
    %c0_i32_2 = arith.constant 0 : i32
    return %c0_i32, %c0_i32_0, %c0_i32_1 : i32, i32, i32
  }
  func.func @transform_3(%arg0: i32) -> (i32, i32) {
    %c0_i32 = arith.constant 0 : i32
    %c0_i32_0 = arith.constant 0 : i32
    %c0_i32_1 = arith.constant 0 : i32
    return %c0_i32, %c0_i32_0 : i32, i32
  }
  func.func @transform_4(%arg0: i32) -> (i32, i32) {
    %c0_i32 = arith.constant 0 : i32
    %c0_i32_0 = arith.constant 0 : i32
    %c0_i32_1 = arith.constant 0 : i32
    return %c0_i32, %c0_i32_0 : i32, i32
  }
  func.func @transform_5(%arg0: i32) -> (i32, i32, i32) {
    %c0_i32 = arith.constant 0 : i32
    %c0_i32_0 = arith.constant 0 : i32
    %c0_i32_1 = arith.constant 0 : i32
    %c0_i32_2 = arith.constant 0 : i32
    return %c0_i32, %c0_i32_0, %c0_i32_1 : i32, i32, i32
  }
  func.func @transform_6(%arg0: i32) -> (i32, i32) {
    %c0_i32 = arith.constant 0 : i32
    %c0_i32_0 = arith.constant 0 : i32
    %c0_i32_1 = arith.constant 0 : i32
    return %c0_i32, %c0_i32_0 : i32, i32
  }
  func.func @transform_7(%arg0: i32) -> (i32, i32, i32) {
    %c0_i32 = arith.constant 0 : i32
    %c0_i32_0 = arith.constant 0 : i32
    %c0_i32_1 = arith.constant 0 : i32
    return %arg0, %c0_i32, %c0_i32_0 : i32, i32, i32
  }
}

</mosaic_0001>

<llo_original>
// kernel: _forward_jit.1
$region0: #{_forward_jit.1}
  #allocation0 [shape = 'u32[]', space=smem, size = 0x4, offset = 0x4, fixed_abs, tag = 'smem constant byte address 0x4 - core index']
  #allocation1 [shape = 'u32[144,128]{1,0:T(1,128)}', space=vmem, size = 0x12000, scoped, tag = 'internal scratch']
  %s0 = inlined_call_operand.vmem [shape: f32[16,512], index: 0, kind: input, shape index: {}]
  %s1 = inlined_call_operand.vmem [shape: f32[72,16], index: 1, kind: input, shape index: {}]
  %s2 = inlined_call_operand.vmem [shape: f32[3,256,128], index: 2, kind: input, shape index: {}]
  %s3 = inlined_call_operand.vmem [shape: f32[24,128], index: 3, kind: input, shape index: {}]
  %s4 = inlined_call_operand.vmem [shape: f32[96,24], index: 4, kind: input, shape index: {}]
  %s5 = inlined_call_operand.vmem [shape: f32[3,128,160], index: 5, kind: input, shape index: {}]
  %s6 = inlined_call_operand.vmem [shape: f32[32,160], index: 6, kind: input, shape index: {}]
  %s7 = inlined_call_operand.vmem [shape: f32[2,32,160], index: 7, kind: output, shape index: {}]
  %s8 = sld [smem:[#allocation0]]
  $region84: #{_forward_jit.1} parent=0
    _
  %s10 = ssub.s32 1, %s8
  %s11 = scalar_select 0, %s10, %s8
  $region1: #{_forward_jit.1} parent=0
    #allocation2 [shape = 'u8[32768]{0}', space=vmem, size = 0x8000, scoped, tag = 'input window, operand 0']
    loop: start=0, step=1, limit=4
    $region2: #{_forward_jit.1} parent=1 // loop_pre_header
      _
    $region3: #{_forward_jit.1} parent=1 // loop_header
      %s13 = sphi 0, %s17
      %p14 = scmp.ge.s32.totalorder %s13, 4
      %s23 = sphi 0, %s25
      %s26 = sphi 0, %s23
      %s27 = sphi 0, %s26
      %s43 = sphi 0, %s27
      %s47 = sphi 0, %s47
      %s49 = sphi 0, %s47
      %s50 = sphi 0, %s49
      %s64 = sphi 0, %s50
      %s68 = sphi 0, %s68
      %s70 = sphi 0, %s68
      %s71 = sphi 0, %s70
      %s85 = sphi 0, %s71
      %s89 = sphi 0, %s89
      %s91 = sphi 0, %s89
      %s92 = sphi 0, %s91
      %s106 = sphi 0, %s92
      %s110 = sphi 0, %s110
      %s112 = sphi 0, %s110
      %s113 = sphi 0, %s112
      %s127 = sphi 0, %s113
      %s131 = sphi 0, %s131
      %s133 = sphi 0, %s131
      %s134 = sphi 0, %s133
      %s148 = sphi 0, %s134
      %s152 = sphi 0, %s152
      %s154 = sphi 0, %s152
      %s155 = sphi 0, %s154
      %s169 = sphi 0, %s155
      %s175 = sphi 0, %s177
      %s178 = sphi 0, %s175
      %s179 = sphi 0, %s178
      %s195 = sphi 0, %s179
    $region4: #{_forward_jit.1} parent=1 // loop_header_branch
      %16 = sbr.rel (%p14) target = $region8
    $region5: #{_forward_jit.1} parent=1 // loop_body
      %s18 = ssub.s32 %s13, 1
      %s19 = ssub.s32 %s13, 2
      %s20 = sadd.s32 %s13, 1
      %s21 = ssub.s32 %s13, %s20
      %p22 = scmp.eq.s32.totalorder %s21, 0
      %s24 = sadd.s32 %s23, 1
      %s25 = scalar_select %p22, %s23, %s24
      %p28 = pneg %p22
      %p29 = scmp.eq.s32.totalorder %s13, 1
      %p30 = por %p28, %p29
      %p31 = scmp.ne.s32.totalorder %s23, %s26
      %p32 = scmp.eq.s32.totalorder %s13, 0
      %p33 = por %p31, %p32
      %p34 = scmp.ne.s32.totalorder %s23, %s26
      %p35 = scmp.eq.s32.totalorder %s18, 1
      %p36 = por %p34, %p35
      %p37 = scmp.ne.s32.totalorder %s26, %s27
      %p38 = scmp.eq.s32.totalorder %s18, 0
      %p39 = por %p37, %p38
      %p40 = scmp.ne.s32.totalorder %s26, %s27
      %p41 = scmp.eq.s32.totalorder %s19, 1
      %p42 = por %p40, %p41
      %p44 = scmp.ne.s32.totalorder %s27, %s43
      %p45 = scmp.eq.s32.totalorder %s19, 0
      %p46 = por %p44, %p45
      %s48 = sadd.s32 %s47, 1
      %p51 = scmp.eq.s32.totalorder %s13, 1
      %p52 = scmp.ne.s32.totalorder %s47, %s49
      %p53 = scmp.eq.s32.totalorder %s13, 0
      %p54 = por %p52, %p53
      %p55 = scmp.ne.s32.totalorder %s47, %s49
      %p56 = scmp.eq.s32.totalorder %s18, 1
      %p57 = por %p55, %p56
      %p58 = scmp.ne.s32.totalorder %s49, %s50
      %p59 = scmp.eq.s32.totalorder %s18, 0
      %p60 = por %p58, %p59
      %p61 = scmp.ne.s32.totalorder %s49, %s50
      %p62 = scmp.eq.s32.totalorder %s19, 1
      %p63 = por %p61, %p62
      %p65 = scmp.ne.s32.totalorder %s50, %s64
      %p66 = scmp.eq.s32.totalorder %s19, 0
      %p67 = por %p65, %p66
      %s69 = sadd.s32 %s68, 1
      %p72 = scmp.eq.s32.totalorder %s13, 1
      %p73 = scmp.ne.s32.totalorder %s68, %s70
      %p74 = scmp.eq.s32.totalorder %s13, 0
      %p75 = por %p73, %p74
      %p76 = scmp.ne.s32.totalorder %s68, %s70
      %p77 = scmp.eq.s32.totalorder %s18, 1
      %p78 = por %p76, %p77
      %p79 = scmp.ne.s32.totalorder %s70, %s71
      %p80 = scmp.eq.s32.totalorder %s18, 0
      %p81 = por %p79, %p80
      %p82 = scmp.ne.s32.totalorder %s70, %s71
      %p83 = scmp.eq.s32.totalorder %s19, 1
      %p84 = por %p82, %p83
      %p86 = scmp.ne.s32.totalorder %s71, %s85
      %p87 = scmp.eq.s32.totalorder %s19, 0
      %p88 = por %p86, %p87
      %s90 = sadd.s32 %s89, 1
      %p93 = scmp.eq.s32.totalorder %s13, 1
      %p94 = scmp.ne.s32.totalorder %s89, %s91
      %p95 = scmp.eq.s32.totalorder %s13, 0
      %p96 = por %p94, %p95
      %p97 = scmp.ne.s32.totalorder %s89, %s91
      %p98 = scmp.eq.s32.totalorder %s18, 1
      %p99 = por %p97, %p98
      %p100 = scmp.ne.s32.totalorder %s91, %s92
      %p101 = scmp.eq.s32.totalorder %s18, 0
      %p102 = por %p100, %p101
      %p103 = scmp.ne.s32.totalorder %s91, %s92
      %p104 = scmp.eq.s32.totalorder %s19, 1
      %p105 = por %p103, %p104
      %p107 = scmp.ne.s32.totalorder %s92, %s106
      %p108 = scmp.eq.s32.totalorder %s19, 0
      %p109 = por %p107, %p108
      %s111 = sadd.s32 %s110, 1
      %p114 = scmp.eq.s32.totalorder %s13, 1
      %p115 = scmp.ne.s32.totalorder %s110, %s112
      %p116 = scmp.eq.s32.totalorder %s13, 0
      %p117 = por %p115, %p116
      %p118 = scmp.ne.s32.totalorder %s110, %s112
      %p119 = scmp.eq.s32.totalorder %s18, 1
      %p120 = por %p118, %p119
      %p121 = scmp.ne.s32.totalorder %s112, %s113
      %p122 = scmp.eq.s32.totalorder %s18, 0
      %p123 = por %p121, %p122
      %p124 = scmp.ne.s32.totalorder %s112, %s113
      %p125 = scmp.eq.s32.totalorder %s19, 1
      %p126 = por %p124, %p125
      %p128 = scmp.ne.s32.totalorder %s113, %s127
      %p129 = scmp.eq.s32.totalorder %s19, 0
      %p130 = por %p128, %p129
      %s132 = sadd.s32 %s131, 1
      %p135 = scmp.eq.s32.totalorder %s13, 1
      %p136 = scmp.ne.s32.totalorder %s131, %s133
      %p137 = scmp.eq.s32.totalorder %s13, 0
      %p138 = por %p136, %p137
      %p139 = scmp.ne.s32.totalorder %s131, %s133
      %p140 = scmp.eq.s32.totalorder %s18, 1
      %p141 = por %p139, %p140
      %p142 = scmp.ne.s32.totalorder %s133, %s134
      %p143 = scmp.eq.s32.totalorder %s18, 0
      %p144 = por %p142, %p143
      %p145 = scmp.ne.s32.totalorder %s133, %s134
      %p146 = scmp.eq.s32.totalorder %s19, 1
      %p147 = por %p145, %p146
      %p149 = scmp.ne.s32.totalorder %s134, %s148
      %p150 = scmp.eq.s32.totalorder %s19, 0
      %p151 = por %p149, %p150
      %s153 = sadd.s32 %s152, 1
      %p156 = scmp.eq.s32.totalorder %s13, 1
      %p157 = scmp.ne.s32.totalorder %s152, %s154
      %p158 = scmp.eq.s32.totalorder %s13, 0
      %p159 = por %p157, %p158
      %p160 = scmp.ne.s32.totalorder %s152, %s154
      %p161 = scmp.eq.s32.totalorder %s18, 1
      %p162 = por %p160, %p161
      %p163 = scmp.ne.s32.totalorder %s154, %s155
      %p164 = scmp.eq.s32.totalorder %s18, 0
      %p165 = por %p163, %p164
      %p166 = scmp.ne.s32.totalorder %s154, %s155
      %p167 = scmp.eq.s32.totalorder %s19, 1
      %p168 = por %p166, %p167
      %p170 = scmp.ne.s32.totalorder %s155, %s169
      %p171 = scmp.eq.s32.totalorder %s19, 0
      %p172 = por %p170, %p171
      %s173 = ssub.s32 %s13, %s20
      %p174 = scmp.eq.s32.totalorder %s173, 0
      %s176 = sadd.s32 %s175, 1
      %s177 = scalar_select %p174, %s175, %s176
      %p180 = pneg %p174
      %p181 = scmp.eq.s32.totalorder %s13, 1
      %p182 = por %p180, %p181
      %p183 = scmp.ne.s32.totalorder %s175, %s178
      %p184 = scmp.eq.s32.totalorder %s13, 0
      %p185 = por %p183, %p184
      %p186 = scmp.ne.s32.totalorder %s175, %s178
      %p187 = scmp.eq.s32.totalorder %s18, 1
      %p188 = por %p186, %p187
      %p189 = scmp.ne.s32.totalorder %s178, %s179
      %p190 = scmp.eq.s32.totalorder %s18, 0
      %p191 = por %p189, %p190
      %p192 = scmp.ne.s32.totalorder %s178, %s179
      %p193 = scmp.eq.s32.totalorder %s19, 1
      %p194 = por %p192, %p193
      %p196 = scmp.ne.s32.totalorder %s179, %s195
      %p197 = scmp.eq.s32.totalorder %s19, 0
      %p198 = por %p196, %p197
      %p199 = scmp.le.s32.totalorder 1, %s13
      %p200 = scmp.lt.s32.totalorder %s13, 3
      %p201 = pnand %p199, %p200
      %p202 = pneg %p201
      // Predicated region
      $region9: #{_forward_jit.1} parent=5 // pred_check
        _
      $region10: #{_forward_jit.1} parent=5 // pred_check_branch
        %204 = sbr.rel (%p201) target = $region12
      $region11: #{_forward_jit.1} parent=5 // pred_region
        %s205 = ssub.s32 %s13, 1
        // Predicated region
        $region13: #{_forward_jit.1} parent=11 // pred_check
          %p206 = pneg %p60
        $region14: #{_forward_jit.1} parent=11 // pred_check_branch
          %208 = sbr.rel (%p206) target = $region16
        $region15: #{_forward_jit.1} parent=11 // pred_region
          _
        $region16: #{_forward_jit.1} parent=11 // pred_fallthru
          _
        // Predicated region
        $region17: #{_forward_jit.1} parent=11 // pred_check
          %p209 = pneg %p81
        $region18: #{_forward_jit.1} parent=11 // pred_check_branch
          %211 = sbr.rel (%p209) target = $region20
        $region19: #{_forward_jit.1} parent=11 // pred_region
          _
        $region20: #{_forward_jit.1} parent=11 // pred_fallthru
          _
        // Predicated region
        $region21: #{_forward_jit.1} parent=11 // pred_check
          %p212 = pneg %p102
        $region22: #{_forward_jit.1} parent=11 // pred_check_branch
          %214 = sbr.rel (%p212) target = $region24
        $region23: #{_forward_jit.1} parent=11 // pred_region
          _
        $region24: #{_forward_jit.1} parent=11 // pred_fallthru
          _
        // Predicated region
        $region25: #{_forward_jit.1} parent=11 // pred_check
          %p215 = pneg %p123
        $region26: #{_forward_jit.1} parent=11 // pred_check_branch
          %217 = sbr.rel (%p215) target = $region28
        $region27: #{_forward_jit.1} parent=11 // pred_region
          _
        $region28: #{_forward_jit.1} parent=11 // pred_fallthru
          _
        // Predicated region
        $region29: #{_forward_jit.1} parent=11 // pred_check
          %p218 = pneg %p144
        $region30: #{_forward_jit.1} parent=11 // pred_check_branch
          %220 = sbr.rel (%p218) target = $region32
        $region31: #{_forward_jit.1} parent=11 // pred_region
          _
        $region32: #{_forward_jit.1} parent=11 // pred_fallthru
          _
        // Predicated region
        $region33: #{_forward_jit.1} parent=11 // pred_check
          %p221 = pneg %p165
        $region34: #{_forward_jit.1} parent=11 // pred_check_branch
          %223 = sbr.rel (%p221) target = $region36
        $region35: #{_forward_jit.1} parent=11 // pred_region
          _
        $region36: #{_forward_jit.1} parent=11 // pred_fallthru
          _
      $region12: #{_forward_jit.1} parent=5 // pred_fallthru
        _
      %p224 = scmp.lt.s32.totalorder %s13, 2
      // Predicated region
      $region37: #{_forward_jit.1} parent=5 // pred_check
        %p225 = pneg %p224
      $region38: #{_forward_jit.1} parent=5 // pred_check_branch
        %227 = sbr.rel (%p225) target = $region40
      $region39: #{_forward_jit.1} parent=5 // pred_region
        // Predicated region
        $region41: #{_forward_jit.1} parent=39 // pred_check
          %p228 = pneg %p33
        $region42: #{_forward_jit.1} parent=39 // pred_check_branch
          %230 = sbr.rel (%p228) target = $region44
        $region43: #{_forward_jit.1} parent=39 // pred_region
          %s231 = sand.u32 %s23, 1
          %s232 = sand.u32 %s23, 1
          %s233 = smul.addr %s232, 32
          %s234 = scalar_lea.vmem [#allocation2], %s233
          %s235 = smul.u32 2, %s13
          %s236 = smul.addr %s235, 8
          %s237 = scalar_lea.vmem %s0, %s236
          // Predicated region
          $region45: #{_forward_jit.1} parent=43 // pred_check
            _
          $region46: #{_forward_jit.1} parent=43 // pred_check_branch
            %239 = sbr.rel (0) target = $region48
          $region47: #{_forward_jit.1} parent=43 // pred_region
            // Predicated region
            $region49: #{_forward_jit.1} parent=47 // pred_check
              _
            $region50: #{_forward_jit.1} parent=47 // pred_check_branch
              %241 = sbr.rel (0) target = $region52
            $region51: #{_forward_jit.1} parent=47 // pred_region
              loop: start=0, step=1, limit=1
              $region53: #{_forward_jit.1} parent=51 // loop_pre_header
                _
              $region54: #{_forward_jit.1} parent=51 // loop_header
                %s243 = sphi 0, %s247
                %p244 = scmp.ge.s32.totalorder %s243, 1
                %s248 = sphi %s237, %s237
                %s249 = sphi %s234, %s234
              $region55: #{_forward_jit.1} parent=51 // loop_header_branch
                %246 = sbr.rel (%p244) target = $region59
              $region56: #{_forward_jit.1} parent=51 // loop_body
                %v250 = vld [vmem:[%s248] sm:$0xff]
                %251 = vst [vmem:[%s249] sm:$0xff] %v250
                %v252 = vld [vmem:[%s248 + $0x8] sm:$0xff]
                %253 = vst [vmem:[%s249 + $0x8] sm:$0xff] %v252
                %v254 = vld [vmem:[%s248 + $0x20] sm:$0xff]
                %255 = vst [vmem:[%s249 + $0x10] sm:$0xff] %v254
                %v256 = vld [vmem:[%s248 + $0x28] sm:$0xff]
                %257 = vst [vmem:[%s249 + $0x18] sm:$0xff] %v256
              $region57: #{_forward_jit.1} parent=51 // loop_footer
                %s247 = sadd.s32 1, %s243
              $region58: #{_forward_jit.1} parent=51 // loop_footer_branch
                %242 = sbr.rel target = $region54
              $region59: #{_forward_jit.1} parent=51 // loop_exit
                _
            $region52: #{_forward_jit.1} parent=47 // pred_fallthru
              _
            // Predicated region
            $region60: #{_forward_jit.1} parent=47 // pred_check
              _
            $region61: #{_forward_jit.1} parent=47 // pred_check_branch
              %259 = sbr.rel target = $region63
            $region62: #{_forward_jit.1} parent=47 // pred_region
              _
            $region63: #{_forward_jit.1} parent=47 // pred_fallthru
              _
          $region48: #{_forward_jit.1} parent=43 // pred_fallthru
            _
          %260 = vnop
        $region44: #{_forward_jit.1} parent=39 // pred_fallthru
          _
      $region40: #{_forward_jit.1} parent=5 // pred_fallthru
        _
      %p261 = scmp.le.s32.totalorder 1, %s13
      %p262 = scmp.lt.s32.totalorder %s13, 3
      %p263 = pnand %p261, %p262
      %p264 = pneg %p263
      // Predicated region
      $region64: #{_forward_jit.1} parent=5 // pred_check
        _
      $region65: #{_forward_jit.1} parent=5 // pred_check_branch
        %266 = sbr.rel (%p263) target = $region67
      $region66: #{_forward_jit.1} parent=5 // pred_region
        %s267 = ssub.s32 %s13, 1
        %s268 = sand.u32 %s26, 1
        %s269 = sand.u32 %s26, 1
        %s270 = smul.addr %s269, 32
        %s271 = scalar_lea.vmem [#allocation2], %s270
        // Predicated region
        $region68: #{_forward_jit.1} parent=66 // pred_check
          %p272 = pneg %p39
        $region69: #{_forward_jit.1} parent=66 // pred_check_branch
          %274 = sbr.rel (%p272) target = $region71
        $region70: #{_forward_jit.1} parent=66 // pred_region
          _
        $region71: #{_forward_jit.1} parent=66 // pred_fallthru
          _
        %s275 = sand.u32 %s26, 1
        %s276 = sand.u32 %s26, 1
        %s277 = smul.addr %s276, 32
        %s278 = scalar_lea.vmem [#allocation2], %s277
        %p279 = pneg %p39
        %p280 = pneg %p36
        %p281 = pneg %p60
        %p282 = pneg %p57
        %p283 = pneg %p81
        %p284 = pneg %p78
        %p285 = pneg %p102
        %p286 = pneg %p99
        %p287 = pneg %p123
        %p288 = pneg %p120
        %p289 = pneg %p144
        %p290 = pneg %p141
        %p291 = pneg %p165
        %p292 = pneg %p162
        %p293 = pneg %p191
        %p294 = pneg %p188
        %p295 = scmp.lt.s32.totalorder %s18, 1
        %s296 = scalar_select %p295, %s18, 1
        %s297 = smul.addr %s296, 8
        %s298 = smul.addr %s297, 8
        %s299 = scalar_lea.vmem %s7, %s298
        %s300 = smul.u32 2, %s18
        %p301 = scmp.lt.s32.totalorder %s18, 1
        %s302 = scalar_select %p301, %s18, 1
        %s303 = smul.addr %s302, 8
        %s304 = smul.addr %s303, 8
        %s305 = scalar_lea.vmem %s7, %s304
        %v306 = vld [vmem:[%s271] sm:$0xff]
        %v307 = vld [vmem:[%s271 + $0x8] sm:$0xff]
        %v308 = vld [vmem:[%s271 + $0x10] sm:$0xff]
        %v309 = vld [vmem:[%s271 + $0x18] sm:$0xff]
        %v310 = vld [vmem:[%s1] sm:$0xff]
        %v311 = vld [vmem:[%s1 + $0x8] sm:$0xff]
        %v312 = vld [vmem:[%s1 + $0x10] sm:$0xff]
        %v313 = vld [vmem:[%s1 + $0x18] sm:$0xff]
        %v314 = vld [vmem:[%s1 + $0x20] sm:$0xff]
        %v315 = vld [vmem:[%s1 + $0x28] sm:$0xff]
        %v316 = vld [vmem:[%s1 + $0x30] sm:$0xff]
        %v317 = vld [vmem:[%s1 + $0x38] sm:$0xff]
        %v318 = vld [vmem:[%s1 + $0x40] sm:$0xff]
        %vm319 = vcmask 130048
        %v321 = vsel %vm319, %v310, 0
        %v324 = vsel %vm319, %v311, 0
        %v327 = vsel %vm319, %v312, 0
        %v330 = vsel %vm319, %v313, 0
        %v333 = vsel %vm319, %v314, 0
        %v336 = vsel %vm319, %v315, 0
        %v339 = vsel %vm319, %v316, 0
        %v342 = vsel %vm319, %v317, 0
        %v345 = vsel %vm319, %v318, 0
        %347 = vmatprep.subr.mxu0 %v307
        %348 = vmatpush1.msra.mxu0 %v306
        %349 = vmatprep.subr.mxu0 %v309
        %350 = vmatpush1.msra.mxu0 %v308
        %351 = vmatprep.subr.mxu0 0.0
        %352 = vmatpush1.msra.mxu0 0.0
        %353 = vmatprep.subr.mxu0 0.0
        %354 = vmatpush1.msra.mxu0 0.0
        %355 = vmatprep.subr.mxu0 0.0
        %356 = vmatpush1.msra.mxu0 0.0
        %357 = vmatprep.subr.mxu0 0.0
        %358 = vmatpush1.msra.mxu0 0.0
        %359 = vmatprep.subr.mxu0 0.0
        %360 = vmatpush1.msra.mxu0 0.0
        %361 = vmatprep.subr.mxu0 0.0
        %362 = vmatpush1.msra.mxu0 0.0
        %363 = vmatprep.subr.mxu0 0.0
        %364 = vmatpush1.msra.mxu0 0.0
        %365 = vmatprep.subr.mxu0 0.0
        %366 = vmatpush1.msra.mxu0 0.0
        %367 = vmatprep.subr.mxu0 0.0
        %368 = vmatpush1.msra.mxu0 0.0
        %369 = vmatprep.subr.mxu0 0.0
        %370 = vmatpush1.msra.mxu0 0.0
        %371 = vmatprep.subr.mxu0 0.0
        %372 = vmatpush1.msra.mxu0 0.0
        %373 = vmatprep.subr.mxu0 0.0
        %374 = vmatpush1.msra.mxu0 0.0
        %375 = vmatprep.subr.mxu0 0.0
        %376 = vmatpush1.msra.mxu0 0.0
        %377 = vmatprep.subr.mxu0 0.0
        %378 = vmatpush1.msra.mxu0 0.0
        %379 = vmatprep.subr.mxu0 0.0
        %380 = vmatpush1.msra.mxu0 0.0
        %381 = vmatprep.subr.mxu0 0.0
        %382 = vmatpush1.msra.mxu0 0.0
        %383 = vmatprep.subr.mxu0 0.0
        %384 = vmatpush1.msra.mxu0 0.0
        %385 = vmatprep.subr.mxu0 0.0
        %386 = vmatpush1.msra.mxu0 0.0
        %387 = vmatprep.subr.mxu0 0.0
        %388 = vmatpush1.msra.mxu0 0.0
        %389 = vmatprep.subr.mxu0 0.0
        %390 = vmatpush1.msra.mxu0 0.0
        %391 = vmatprep.subr.mxu0 0.0
        %392 = vmatpush1.msra.mxu0 0.0
        %393 = vmatprep.subr.mxu0 0.0
        %394 = vmatpush1.msra.mxu0 0.0
        %395 = vmatprep.subr.mxu0 0.0
        %396 = vmatpush1.msra.mxu0 0.0
        %397 = vmatprep.subr.mxu0 0.0
        %398 = vmatpush1.msra.mxu0 0.0
        %399 = vmatprep.subr.mxu0 0.0
        %400 = vmatpush1.msra.mxu0 0.0
        %401 = vmatprep.subr.mxu0 0.0
        %402 = vmatpush1.msra.mxu0 0.0
        %403 = vmatprep.subr.mxu0 0.0
        %404 = vmatpush1.msra.mxu0 0.0
        %405 = vmatprep.subr.mxu0 0.0
        %406 = vmatpush1.msra.mxu0 0.0
        %407 = vmatprep.subr.mxu0 0.0
        %408 = vmatpush1.msra.mxu0 0.0
        %409 = vmatprep.subr.mxu0 0.0
        %410 = vmatpush1.msra.mxu0 0.0
        %411 = vmatprep.mubr.f32.mxu0 0.0
        %412 = vmatmul.mubr.f32.gmra.mrb[0].mxu0 %v321
        %v413 = vpop.f32.mrb[0].mxu0
        %v414 = vadd.f32 0.0, %v413
        %v415 = vpop.f32.mrb[0].mxu0
        %v416 = vadd.f32 0.0, %v415
        %417 = vmatprep.mubr.f32.mxu0 0.0
        %418 = vmatmul.mubr.f32.gmra.mrb[0].mxu0 %v324
        %v419 = vpop.f32.mrb[0].mxu0
        %v420 = vadd.f32 0.0, %v419
        %v421 = vpop.f32.mrb[0].mxu0
        %v422 = vadd.f32 0.0, %v421
        %423 = vmatprep.mubr.f32.mxu0 0.0
        %424 = vmatmul.mubr.f32.gmra.mrb[0].mxu0 %v327
        %v425 = vpop.f32.mrb[0].mxu0
        %v426 = vadd.f32 0.0, %v425
        %v427 = vpop.f32.mrb[0].mxu0
        %v428 = vadd.f32 0.0, %v427
        %429 = vmatprep.mubr.f32.mxu0 0.0
        %430 = vmatmul.mubr.f32.gmra.mrb[0].mxu0 %v330
        %v431 = vpop.f32.mrb[0].mxu0
        %v432 = vadd.f32 0.0, %v431
        %v433 = vpop.f32.mrb[0].mxu0
        %v434 = vadd.f32 0.0, %v433
        %435 = vmatprep.mubr.f32.mxu0 0.0
        %436 = vmatmul.mubr.f32.gmra.mrb[0].mxu0 %v333
        %v437 = vpop.f32.mrb[0].mxu0
        %v438 = vadd.f32 0.0, %v437
        %v439 = vpop.f32.mrb[0].mxu0
        %v440 = vadd.f32 0.0, %v439
        %441 = vmatprep.mubr.f32.mxu0 0.0
        %442 = vmatmul.mubr.f32.gmra.mrb[0].mxu0 %v336
        %v443 = vpop.f32.mrb[0].mxu0
        %v444 = vadd.f32 0.0, %v443
        %v445 = vpop.f32.mrb[0].mxu0
        %v446 = vadd.f32 0.0, %v445
        %447 = vmatprep.mubr.f32.mxu0 0.0
        %448 = vmatmul.mubr.f32.gmra.mrb[0].mxu0 %v339
        %v449 = vpop.f32.mrb[0].mxu0
        %v450 = vadd.f32 0.0, %v449
        %v451 = vpop.f32.mrb[0].mxu0
        %v452 = vadd.f32 0.0, %v451
        %453 = vmatprep.mubr.f32.mxu0 0.0
        %454 = vmatmul.mubr.f32.gmra.mrb[0].mxu0 %v342
        %v455 = vpop.f32.mrb[0].mxu0
        %v456 = vadd.f32 0.0, %v455
        %v457 = vpop.f32.mrb[0].mxu0
        %v458 = vadd.f32 0.0, %v457
        %459 = vmatprep.mubr.f32.mxu0 0.0
        %460 = vmatmul.mubr.f32.gmra.mrb[0].mxu0 %v345
        %v461 = vpop.f32.mrb[0].mxu0
        %v462 = vadd.f32 0.0, %v461
        %v463 = vpop.f32.mrb[0].mxu0
        %v464 = vadd.f32 0.0, %v463
        %465 = vdwg.mxu0
        %v466 = vld [vmem:[%s3] sm:$0xff]
        %v467 = vld [vmem:[%s3 + $0x8] sm:$0xff]
        %v468 = vld [vmem:[%s3 + $0x10] sm:$0xff]
        %v469 = vld [vmem:[%s2] sm:$0xff]
        %v470 = vld [vmem:[%s2 + $0x8] sm:$0xff]
        %v471 = vld [vmem:[%s2 + $0x10] sm:$0xff]
        %v472 = vld [vmem:[%s2 + $0x18] sm:$0xff]
        %v473 = vld [vmem:[%s2 + $0x20] sm:$0xff]
        %v474 = vld [vmem:[%s2 + $0x28] sm:$0xff]
        %v475 = vld [vmem:[%s2 + $0x30] sm:$0xff]
        %v476 = vld [vmem:[%s2 + $0x38] sm:$0xff]
        %v477 = vld [vmem:[%s2 + $0x40] sm:$0xff]
        %v478 = vld [vmem:[%s2 + $0x48] sm:$0xff]
        %v479 = vld [vmem:[%s2 + $0x50] sm:$0xff]
        %v480 = vld [vmem:[%s2 + $0x58] sm:$0xff]
        %v481 = vld [vmem:[%s2 + $0x60] sm:$0xff]
        %v482 = vld [vmem:[%s2 + $0x68] sm:$0xff]
        %v483 = vld [vmem:[%s2 + $0x70] sm:$0xff]
        %v484 = vld [vmem:[%s2 + $0x78] sm:$0xff]
        %v485 = vld [vmem:[%s2 + $0x80] sm:$0xff]
        %v486 = vld [vmem:[%s2 + $0x88] sm:$0xff]
        %v487 = vld [vmem:[%s2 + $0x90] sm:$0xff]
        %v488 = vld [vmem:[%s2 + $0x98] sm:$0xff]
        %v489 = vld [vmem:[%s2 + $0xa0] sm:$0xff]
        %v490 = vld [vmem:[%s2 + $0xa8] sm:$0xff]
        %v491 = vld [vmem:[%s2 + $0xb0] sm:$0xff]
        %v492 = vld [vmem:[%s2 + $0xb8] sm:$0xff]
        %v493 = vld [vmem:[%s2 + $0xc0] sm:$0xff]
        %v494 = vld [vmem:[%s2 + $0xc8] sm:$0xff]
        %v495 = vld [vmem:[%s2 + $0xd0] sm:$0xff]
        %v496 = vld [vmem:[%s2 + $0xd8] sm:$0xff]
        %v497 = vld [vmem:[%s2 + $0xe0] sm:$0xff]
        %v498 = vld [vmem:[%s2 + $0xe8] sm:$0xff]
        %v499 = vld [vmem:[%s2 + $0xf0] sm:$0xff]
        %v500 = vld [vmem:[%s2 + $0xf8] sm:$0xff]
        %501 = vmatprep.subr.mxu0 0.0
        %502 = vmatpush1.msra.mxu0 %v469
        %503 = vmatprep.subr.mxu0 0.0
        %504 = vmatpush1.msra.mxu0 %v470
        %505 = vmatprep.subr.mxu0 0.0
        %506 = vmatpush1.msra.mxu0 %v471
        %507 = vmatprep.subr.mxu0 0.0
        %508 = vmatpush1.msra.mxu0 %v472
        %509 = vmatprep.subr.mxu0 0.0
        %510 = vmatpush1.msra.mxu0 %v473
        %511 = vmatprep.subr.mxu0 0.0
        %512 = vmatpush1.msra.mxu0 %v474
        %513 = vmatprep.subr.mxu0 0.0
        %514 = vmatpush1.msra.mxu0 %v475
        %515 = vmatprep.subr.mxu0 0.0
        %516 = vmatpush1.msra.mxu0 %v476
        %517 = vmatprep.subr.mxu0 0.0
        %518 = vmatpush1.msra.mxu0 %v477
        %519 = vmatprep.subr.mxu0 0.0
        %520 = vmatpush1.msra.mxu0 %v478
        %521 = vmatprep.subr.mxu0 0.0
        %522 = vmatpush1.msra.mxu0 %v479
        %523 = vmatprep.subr.mxu0 0.0
        %524 = vmatpush1.msra.mxu0 %v480
        %525 = vmatprep.subr.mxu0 0.0
        %526 = vmatpush1.msra.mxu0 %v481
        %527 = vmatprep.subr.mxu0 0.0
        %528 = vmatpush1.msra.mxu0 %v482
        %529 = vmatprep.subr.mxu0 0.0
        %530 = vmatpush1.msra.mxu0 %v483
        %531 = vmatprep.subr.mxu0 0.0
        %532 = vmatpush1.msra.mxu0 %v484
        %533 = vmatprep.subr.mxu0 0.0
        %534 = vmatpush1.msra.mxu0 %v485
        %535 = vmatprep.subr.mxu0 0.0
        %536 = vmatpush1.msra.mxu0 %v486
        %537 = vmatprep.subr.mxu0 0.0
        %538 = vmatpush1.msra.mxu0 %v487
        %539 = vmatprep.subr.mxu0 0.0
        %540 = vmatpush1.msra.mxu0 %v488
        %541 = vmatprep.subr.mxu0 0.0
        %542 = vmatpush1.msra.mxu0 %v489
        %543 = vmatprep.subr.mxu0 0.0
        %544 = vmatpush1.msra.mxu0 %v490
        %545 = vmatprep.subr.mxu0 0.0
        %546 = vmatpush1.msra.mxu0 %v491
        %547 = vmatprep.subr.mxu0 0.0
        %548 = vmatpush1.msra.mxu0 %v492
        %549 = vmatprep.subr.mxu0 0.0
        %550 = vmatpush1.msra.mxu0 %v493
        %551 = vmatprep.subr.mxu0 0.0
        %552 = vmatpush1.msra.mxu0 %v494
        %553 = vmatprep.subr.mxu0 0.0
        %554 = vmatpush1.msra.mxu0 %v495
        %555 = vmatprep.subr.mxu0 0.0
        %556 = vmatpush1.msra.mxu0 %v496
        %557 = vmatprep.subr.mxu0 0.0
        %558 = vmatpush1.msra.mxu0 %v497
        %559 = vmatprep.subr.mxu0 0.0
        %560 = vmatpush1.msra.mxu0 %v498
        %561 = vmatprep.subr.mxu0 0.0
        %562 = vmatpush1.msra.mxu0 %v499
        %563 = vmatprep.subr.mxu0 0.0
        %564 = vmatpush1.msra.mxu0 %v500
        %565 = vmatprep.mubr.f32.mxu0 %v416
        %566 = vmatmul.mubr.f32.gmra.mrb[0].mxu0 %v414
        %v567 = vpop.f32.mrb[0].mxu0
        %v568 = vadd.f32 0.0, %v567
        %v569 = vpop.f32.mrb[0].mxu0
        %570 = vmatprep.mubr.f32.mxu0 %v422
        %571 = vmatmul.mubr.f32.gmra.mrb[0].mxu0 %v420
        %v572 = vpop.f32.mrb[0].mxu0
        %v573 = vadd.f32 0.0, %v572
        %v574 = vpop.f32.mrb[0].mxu0
        %575 = vmatprep.mubr.f32.mxu0 %v428
        %576 = vmatmul.mubr.f32.gmra.mrb[0].mxu0 %v426
        %v577 = vpop.f32.mrb[0].mxu0
        %v578 = vadd.f32 0.0, %v577
        %v579 = vpop.f32.mrb[0].mxu0
        %580 = vdwg.mxu0
        %v581 = vadd.f32 %v466, %v568
        %v582 = vadd.f32 %v467, %v573
        %v583 = vadd.f32 %v468, %v578
        %s584 = scalar_lea.vmem %s2, 256
        %v585 = vld [vmem:[%s584] sm:$0xff]
        %v586 = vld [vmem:[%s584 + $0x8] sm:$0xff]
        %v587 = vld [vmem:[%s584 + $0x10] sm:$0xff]
        %v588 = vld [vmem:[%s584 + $0x18] sm:$0xff]
        %v589 = vld [vmem:[%s584 + $0x20] sm:$0xff]
        %v590 = vld [vmem:[%s584 + $0x28] sm:$0xff]
        %v591 = vld [vmem:[%s584 + $0x30] sm:$0xff]
        %v592 = vld [vmem:[%s584 + $0x38] sm:$0xff]
        %v593 = vld [vmem:[%s584 + $0x40] sm:$0xff]
        %v594 = vld [vmem:[%s584 + $0x48] sm:$0xff]
        %v595 = vld [vmem:[%s584 + $0x50] sm:$0xff]
        %v596 = vld [vmem:[%s584 + $0x58] sm:$0xff]
        %v597 = vld [vmem:[%s584 + $0x60] sm:$0xff]
        %v598 = vld [vmem:[%s584 + $0x68] sm:$0xff]
        %v599 = vld [vmem:[%s584 + $0x70] sm:$0xff]
        %v600 = vld [vmem:[%s584 + $0x78] sm:$0xff]
        %v601 = vld [vmem:[%s584 + $0x80] sm:$0xff]
        %v602 = vld [vmem:[%s584 + $0x88] sm:$0xff]
        %v603 = vld [vmem:[%s584 + $0x90] sm:$0xff]
        %v604 = vld [vmem:[%s584 + $0x98] sm:$0xff]
        %v605 = vld [vmem:[%s584 + $0xa0] sm:$0xff]
        %v606 = vld [vmem:[%s584 + $0xa8] sm:$0xff]
        %v607 = vld [vmem:[%s584 + $0xb0] sm:$0xff]
        %v608 = vld [vmem:[%s584 + $0xb8] sm:$0xff]
        %v609 = vld [vmem:[%s584 + $0xc0] sm:$0xff]
        %v610 = vld [vmem:[%s584 + $0xc8] sm:$0xff]
        %v611 = vld [vmem:[%s584 + $0xd0] sm:$0xff]
        %v612 = vld [vmem:[%s584 + $0xd8] sm:$0xff]
        %v613 = vld [vmem:[%s584 + $0xe0] sm:$0xff]
        %v614 = vld [vmem:[%s584 + $0xe8] sm:$0xff]
        %v615 = vld [vmem:[%s584 + $0xf0] sm:$0xff]
        %v616 = vld [vmem:[%s584 + $0xf8] sm:$0xff]
        %617 = vmatprep.subr.mxu0 0.0
        %618 = vmatpush1.msra.mxu0 %v585
        %619 = vmatprep.subr.mxu0 0.0
        %620 = vmatpush1.msra.mxu0 %v586
        %621 = vmatprep.subr.mxu0 0.0
        %622 = vmatpush1.msra.mxu0 %v587
        %623 = vmatprep.subr.mxu0 0.0
        %624 = vmatpush1.msra.mxu0 %v588
        %625 = vmatprep.subr.mxu0 0.0
        %626 = vmatpush1.msra.mxu0 %v589
        %627 = vmatprep.subr.mxu0 0.0
        %628 = vmatpush1.msra.mxu0 %v590
        %629 = vmatprep.subr.mxu0 0.0
        %630 = vmatpush1.msra.mxu0 %v591
        %631 = vmatprep.subr.mxu0 0.0
        %632 = vmatpush1.msra.mxu0 %v592
        %633 = vmatprep.subr.mxu0 0.0
        %634 = vmatpush1.msra.mxu0 %v593
        %635 = vmatprep.subr.mxu0 0.0
        %636 = vmatpush1.msra.mxu0 %v594
        %637 = vmatprep.subr.mxu0 0.0
        %638 = vmatpush1.msra.mxu0 %v595
        %639 = vmatprep.subr.mxu0 0.0
        %640 = vmatpush1.msra.mxu0 %v596
        %641 = vmatprep.subr.mxu0 0.0
        %642 = vmatpush1.msra.mxu0 %v597
        %643 = vmatprep.subr.mxu0 0.0
        %644 = vmatpush1.msra.mxu0 %v598
        %645 = vmatprep.subr.mxu0 0.0
        %646 = vmatpush1.msra.mxu0 %v599
        %647 = vmatprep.subr.mxu0 0.0
        %648 = vmatpush1.msra.mxu0 %v600
        %649 = vmatprep.subr.mxu0 0.0
        %650 = vmatpush1.msra.mxu0 %v601
        %651 = vmatprep.subr.mxu0 0.0
        %652 = vmatpush1.msra.mxu0 %v602
        %653 = vmatprep.subr.mxu0 0.0
        %654 = vmatpush1.msra.mxu0 %v603
        %655 = vmatprep.subr.mxu0 0.0
        %656 = vmatpush1.msra.mxu0 %v604
        %657 = vmatprep.subr.mxu0 0.0
        %658 = vmatpush1.msra.mxu0 %v605
        %659 = vmatprep.subr.mxu0 0.0
        %660 = vmatpush1.msra.mxu0 %v606
        %661 = vmatprep.subr.mxu0 0.0
        %662 = vmatpush1.msra.mxu0 %v607
        %663 = vmatprep.subr.mxu0 0.0
        %664 = vmatpush1.msra.mxu0 %v608
        %665 = vmatprep.subr.mxu0 0.0
        %666 = vmatpush1.msra.mxu0 %v609
        %667 = vmatprep.subr.mxu0 0.0
        %668 = vmatpush1.msra.mxu0 %v610
        %669 = vmatprep.subr.mxu0 0.0
        %670 = vmatpush1.msra.mxu0 %v611
        %671 = vmatprep.subr.mxu0 0.0
        %672 = vmatpush1.msra.mxu0 %v612
        %673 = vmatprep.subr.mxu0 0.0
        %674 = vmatpush1.msra.mxu0 %v613
        %675 = vmatprep.subr.mxu0 0.0
        %676 = vmatpush1.msra.mxu0 %v614
        %677 = vmatprep.subr.mxu0 0.0
        %678 = vmatpush1.msra.mxu0 %v615
        %679 = vmatprep.subr.mxu0 0.0
        %680 = vmatpush1.msra.mxu0 %v616
        %681 = vmatprep.mubr.f32.mxu0 %v434
        %682 = vmatmul.mubr.f32.gmra.mrb[0].mxu0 %v432
        %v683 = vpop.f32.mrb[0].mxu0
        %v684 = vadd.f32 0.0, %v683
        %v685 = vpop.f32.mrb[0].mxu0
        %686 = vmatprep.mubr.f32.mxu0 %v440
        %687 = vmatmul.mubr.f32.gmra.mrb[0].mxu0 %v438
        %v688 = vpop.f32.mrb[0].mxu0
        %v689 = vadd.f32 0.0, %v688
        %v690 = vpop.f32.mrb[0].mxu0
        %691 = vmatprep.mubr.f32.mxu0 %v446
        %692 = vmatmul.mubr.f32.gmra.mrb[0].mxu0 %v444
        %v693 = vpop.f32.mrb[0].mxu0
        %v694 = vadd.f32 0.0, %v693
        %v695 = vpop.f32.mrb[0].mxu0
        %696 = vdwg.mxu0
        %v697 = vadd.f32 %v581, %v684
        %v698 = vadd.f32 %v582, %v689
        %v699 = vadd.f32 %v583, %v694
        %s700 = scalar_lea.vmem %s2, 512
        %v701 = vld [vmem:[%s700] sm:$0xff]
        %v702 = vld [vmem:[%s700 + $0x8] sm:$0xff]
        %v703 = vld [vmem:[%s700 + $0x10] sm:$0xff]
        %v704 = vld [vmem:[%s700 + $0x18] sm:$0xff]
        %v705 = vld [vmem:[%s700 + $0x20] sm:$0xff]
        %v706 = vld [vmem:[%s700 + $0x28] sm:$0xff]
        %v707 = vld [vmem:[%s700 + $0x30] sm:$0xff]
        %v708 = vld [vmem:[%s700 + $0x38] sm:$0xff]
        %v709 = vld [vmem:[%s700 + $0x40] sm:$0xff]
        %v710 = vld [vmem:[%s700 + $0x48] sm:$0xff]
        %v711 = vld [vmem:[%s700 + $0x50] sm:$0xff]
        %v712 = vld [vmem:[%s700 + $0x58] sm:$0xff]
        %v713 = vld [vmem:[%s700 + $0x60] sm:$0xff]
        %v714 = vld [vmem:[%s700 + $0x68] sm:$0xff]
        %v715 = vld [vmem:[%s700 + $0x70] sm:$0xff]
        %v716 = vld [vmem:[%s700 + $0x78] sm:$0xff]
        %v717 = vld [vmem:[%s700 + $0x80] sm:$0xff]
        %v718 = vld [vmem:[%s700 + $0x88] sm:$0xff]
        %v719 = vld [vmem:[%s700 + $0x90] sm:$0xff]
        %v720 = vld [vmem:[%s700 + $0x98] sm:$0xff]
        %v721 = vld [vmem:[%s700 + $0xa0] sm:$0xff]
        %v722 = vld [vmem:[%s700 + $0xa8] sm:$0xff]
        %v723 = vld [vmem:[%s700 + $0xb0] sm:$0xff]
        %v724 = vld [vmem:[%s700 + $0xb8] sm:$0xff]
        %v725 = vld [vmem:[%s700 + $0xc0] sm:$0xff]
        %v726 = vld [vmem:[%s700 + $0xc8] sm:$0xff]
        %v727 = vld [vmem:[%s700 + $0xd0] sm:$0xff]
        %v728 = vld [vmem:[%s700 + $0xd8] sm:$0xff]
        %v729 = vld [vmem:[%s700 + $0xe0] sm:$0xff]
        %v730 = vld [vmem:[%s700 + $0xe8] sm:$0xff]
        %v731 = vld [vmem:[%s700 + $0xf0] sm:$0xff]
        %v732 = vld [vmem:[%s700 + $0xf8] sm:$0xff]
        %733 = vmatprep.subr.mxu0 0.0
        %734 = vmatpush1.msra.mxu0 %v701
        %735 = vmatprep.subr.mxu0 0.0
        %736 = vmatpush1.msra.mxu0 %v702
        %737 = vmatprep.subr.mxu0 0.0
        %738 = vmatpush1.msra.mxu0 %v703
        %739 = vmatprep.subr.mxu0 0.0
        %740 = vmatpush1.msra.mxu0 %v704
        %741 = vmatprep.subr.mxu0 0.0
        %742 = vmatpush1.msra.mxu0 %v705
        %743 = vmatprep.subr.mxu0 0.0
        %744 = vmatpush1.msra.mxu0 %v706
        %745 = vmatprep.subr.mxu0 0.0
        %746 = vmatpush1.msra.mxu0 %v707
        %747 = vmatprep.subr.mxu0 0.0
        %748 = vmatpush1.msra.mxu0 %v708
        %749 = vmatprep.subr.mxu0 0.0
        %750 = vmatpush1.msra.mxu0 %v709
        %751 = vmatprep.subr.mxu0 0.0
        %752 = vmatpush1.msra.mxu0 %v710
        %753 = vmatprep.subr.mxu0 0.0
        %754 = vmatpush1.msra.mxu0 %v711
        %755 = vmatprep.subr.mxu0 0.0
        %756 = vmatpush1.msra.mxu0 %v712
        %757 = vmatprep.subr.mxu0 0.0
        %758 = vmatpush1.msra.mxu0 %v713
        %759 = vmatprep.subr.mxu0 0.0
        %760 = vmatpush1.msra.mxu0 %v714
        %761 = vmatprep.subr.mxu0 0.0
        %762 = vmatpush1.msra.mxu0 %v715
        %763 = vmatprep.subr.mxu0 0.0
        %764 = vmatpush1.msra.mxu0 %v716
        %765 = vmatprep.subr.mxu0 0.0
        %766 = vmatpush1.msra.mxu0 %v717
        %767 = vmatprep.subr.mxu0 0.0
        %768 = vmatpush1.msra.mxu0 %v718
        %769 = vmatprep.subr.mxu0 0.0
        %770 = vmatpush1.msra.mxu0 %v719
        %771 = vmatprep.subr.mxu0 0.0
        %772 = vmatpush1.msra.mxu0 %v720
        %773 = vmatprep.subr.mxu0 0.0
        %774 = vmatpush1.msra.mxu0 %v721
        %775 = vmatprep.subr.mxu0 0.0
        %776 = vmatpush1.msra.mxu0 %v722
        %777 = vmatprep.subr.mxu0 0.0
        %778 = vmatpush1.msra.mxu0 %v723
        %779 = vmatprep.subr.mxu0 0.0
        %780 = vmatpush1.msra.mxu0 %v724
        %781 = vmatprep.subr.mxu0 0.0
        %782 = vmatpush1.msra.mxu0 %v725
        %783 = vmatprep.subr.mxu0 0.0
        %784 = vmatpush1.msra.mxu0 %v726
        %785 = vmatprep.subr.mxu0 0.0
        %786 = vmatpush1.msra.mxu0 %v727
        %787 = vmatprep.subr.mxu0 0.0
        %788 = vmatpush1.msra.mxu0 %v728
        %789 = vmatprep.subr.mxu0 0.0
        %790 = vmatpush1.msra.mxu0 %v729
        %791 = vmatprep.subr.mxu0 0.0
        %792 = vmatpush1.msra.mxu0 %v730
        %793 = vmatprep.subr.mxu0 0.0
        %794 = vmatpush1.msra.mxu0 %v731
        %795 = vmatprep.subr.mxu0 0.0
        %796 = vmatpush1.msra.mxu0 %v732
        %797 = vmatprep.mubr.f32.mxu0 %v452
        %798 = vmatmul.mubr.f32.gmra.mrb[0].mxu0 %v450
        %v799 = vpop.f32.mrb[0].mxu0
        %v800 = vadd.f32 0.0, %v799
        %v801 = vpop.f32.mrb[0].mxu0
        %802 = vmatprep.mubr.f32.mxu0 %v458
        %803 = vmatmul.mubr.f32.gmra.mrb[0].mxu0 %v456
        %v804 = vpop.f32.mrb[0].mxu0
        %v805 = vadd.f32 0.0, %v804
        %v806 = vpop.f32.mrb[0].mxu0
        %807 = vmatprep.mubr.f32.mxu0 %v464
        %808 = vmatmul.mubr.f32.gmra.mrb[0].mxu0 %v462
        %v809 = vpop.f32.mrb[0].mxu0
        %v810 = vadd.f32 0.0, %v809
        %v811 = vpop.f32.mrb[0].mxu0
        %812 = vdwg.mxu0
        %v813 = vadd.f32 %v697, %v800
        %v814 = vadd.f32 %v698, %v805
        %v815 = vadd.f32 %v699, %v810
        %v816 = vmax.f32 %v813, 0.0
        %v817 = vmax.f32 %v814, 0.0
        %v818 = vmax.f32 %v815, 0.0
        %v819 = vld [vmem:[%s4] sm:$0xff]
        %v820 = vld [vmem:[%s4 + $0x8] sm:$0xff]
        %v821 = vld [vmem:[%s4 + $0x10] sm:$0xff]
        %v822 = vld [vmem:[%s4 + $0x18] sm:$0xff]
        %v823 = vld [vmem:[%s4 + $0x20] sm:$0xff]
        %v824 = vld [vmem:[%s4 + $0x28] sm:$0xff]
        %v825 = vld [vmem:[%s4 + $0x30] sm:$0xff]
        %v826 = vld [vmem:[%s4 + $0x38] sm:$0xff]
        %v827 = vld [vmem:[%s4 + $0x40] sm:$0xff]
        %v828 = vld [vmem:[%s4 + $0x48] sm:$0xff]
        %v829 = vld [vmem:[%s4 + $0x50] sm:$0xff]
        %v830 = vld [vmem:[%s4 + $0x58] sm:$0xff]
        %vm831 = vcmask 195584
        %v833 = vsel %vm831, %v819, 0
        %v836 = vsel %vm831, %v820, 0
        %v839 = vsel %vm831, %v821, 0
        %v842 = vsel %vm831, %v822, 0
        %v845 = vsel %vm831, %v823, 0
        %v848 = vsel %vm831, %v824, 0
        %v851 = vsel %vm831, %v825, 0
        %v854 = vsel %vm831, %v826, 0
        %v857 = vsel %vm831, %v827, 0
        %v860 = vsel %vm831, %v828, 0
        %v863 = vsel %vm831, %v829, 0
        %v866 = vsel %vm831, %v830, 0
        %868 = vmatprep.subr.mxu0 0.0
        %869 = vmatpush1.msra.mxu0 %v816
        %870 = vmatprep.subr.mxu0 0.0
        %871 = vmatpush1.msra.mxu0 %v817
        %872 = vmatprep.subr.mxu0 0.0
        %873 = vmatpush1.msra.mxu0 %v818
        %874 = vmatprep.subr.mxu0 0.0
        %875 = vmatpush1.msra.mxu0 0.0
        %876 = vmatprep.subr.mxu0 0.0
        %877 = vmatpush1.msra.mxu0 0.0
        %878 = vmatprep.subr.mxu0 0.0
        %879 = vmatpush1.msra.mxu0 0.0
        %880 = vmatprep.subr.mxu0 0.0
        %881 = vmatpush1.msra.mxu0 0.0
        %882 = vmatprep.subr.mxu0 0.0
        %883 = vmatpush1.msra.mxu0 0.0
        %884 = vmatprep.subr.mxu0 0.0
        %885 = vmatpush1.msra.mxu0 0.0
        %886 = vmatprep.subr.mxu0 0.0
        %887 = vmatpush1.msra.mxu0 0.0
        %888 = vmatprep.subr.mxu0 0.0
        %889 = vmatpush1.msra.mxu0 0.0
        %890 = vmatprep.subr.mxu0 0.0
        %891 = vmatpush1.msra.mxu0 0.0
        %892 = vmatprep.subr.mxu0 0.0
        %893 = vmatpush1.msra.mxu0 0.0
        %894 = vmatprep.subr.mxu0 0.0
        %895 = vmatpush1.msra.mxu0 0.0
        %896 = vmatprep.subr.mxu0 0.0
        %897 = vmatpush1.msra.mxu0 0.0
        %898 = vmatprep.subr.mxu0 0.0
        %899 = vmatpush1.msra.mxu0 0.0
        %900 = vmatprep.subr.mxu0 0.0
        %901 = vmatpush1.msra.mxu0 0.0
        %902 = vmatprep.subr.mxu0 0.0
        %903 = vmatpush1.msra.mxu0 0.0
        %904 = vmatprep.subr.mxu0 0.0
        %905 = vmatpush1.msra.mxu0 0.0
        %906 = vmatprep.subr.mxu0 0.0
        %907 = vmatpush1.msra.mxu0 0.0
        %908 = vmatprep.subr.mxu0 0.0
        %909 = vmatpush1.msra.mxu0 0.0
        %910 = vmatprep.subr.mxu0 0.0
        %911 = vmatpush1.msra.mxu0 0.0
        %912 = vmatprep.subr.mxu0 0.0
        %913 = vmatpush1.msra.mxu0 0.0
        %914 = vmatprep.subr.mxu0 0.0
        %915 = vmatpush1.msra.mxu0 0.0
        %916 = vmatprep.subr.mxu0 0.0
        %917 = vmatpush1.msra.mxu0 0.0
        %918 = vmatprep.subr.mxu0 0.0
        %919 = vmatpush1.msra.mxu0 0.0
        %920 = vmatprep.subr.mxu0 0.0
        %921 = vmatpush1.msra.mxu0 0.0
        %922 = vmatprep.subr.mxu0 0.0
        %923 = vmatpush1.msra.mxu0 0.0
        %924 = vmatprep.subr.mxu0 0.0
        %925 = vmatpush1.msra.mxu0 0.0
        %926 = vmatprep.subr.mxu0 0.0
        %927 = vmatpush1.msra.mxu0 0.0
        %928 = vmatprep.subr.mxu0 0.0
        %929 = vmatpush1.msra.mxu0 0.0
        %930 = vmatprep.subr.mxu0 0.0
        %931 = vmatpush1.msra.mxu0 0.0
        %932 = vmatprep.mubr.f32.mxu0 0.0
        %933 = vmatmul.mubr.f32.gmra.mrb[0].mxu0 %v833
        %v934 = vpop.f32.mrb[0].mxu0
        %v935 = vadd.f32 0.0, %v934
        %v936 = vpop.f32.mrb[0].mxu0
        %937 = vmatprep.mubr.f32.mxu0 0.0
        %938 = vmatmul.mubr.f32.gmra.mrb[0].mxu0 %v836
        %v939 = vpop.f32.mrb[0].mxu0
        %v940 = vadd.f32 0.0, %v939
        %v941 = vpop.f32.mrb[0].mxu0
        %942 = vmatprep.mubr.f32.mxu0 0.0
        %943 = vmatmul.mubr.f32.gmra.mrb[0].mxu0 %v839
        %v944 = vpop.f32.mrb[0].mxu0
        %v945 = vadd.f32 0.0, %v944
        %v946 = vpop.f32.mrb[0].mxu0
        %947 = vmatprep.mubr.f32.mxu0 0.0
        %948 = vmatmul.mubr.f32.gmra.mrb[0].mxu0 %v842
        %v949 = vpop.f32.mrb[0].mxu0
        %v950 = vadd.f32 0.0, %v949
        %v951 = vpop.f32.mrb[0].mxu0
        %952 = vmatprep.mubr.f32.mxu0 0.0
        %953 = vmatmul.mubr.f32.gmra.mrb[0].mxu0 %v845
        %v954 = vpop.f32.mrb[0].mxu0
        %v955 = vadd.f32 0.0, %v954
        %v956 = vpop.f32.mrb[0].mxu0
        %957 = vmatprep.mubr.f32.mxu0 0.0
        %958 = vmatmul.mubr.f32.gmra.mrb[0].mxu0 %v848
        %v959 = vpop.f32.mrb[0].mxu0
        %v960 = vadd.f32 0.0, %v959
        %v961 = vpop.f32.mrb[0].mxu0
        %962 = vmatprep.mubr.f32.mxu0 0.0
        %963 = vmatmul.mubr.f32.gmra.mrb[0].mxu0 %v851
        %v964 = vpop.f32.mrb[0].mxu0
        %v965 = vadd.f32 0.0, %v964
        %v966 = vpop.f32.mrb[0].mxu0
        %967 = vmatprep.mubr.f32.mxu0 0.0
        %968 = vmatmul.mubr.f32.gmra.mrb[0].mxu0 %v854
        %v969 = vpop.f32.mrb[0].mxu0
        %v970 = vadd.f32 0.0, %v969
        %v971 = vpop.f32.mrb[0].mxu0
        %972 = vmatprep.mubr.f32.mxu0 0.0
        %973 = vmatmul.mubr.f32.gmra.mrb[0].mxu0 %v857
        %v974 = vpop.f32.mrb[0].mxu0
        %v975 = vadd.f32 0.0, %v974
        %v976 = vpop.f32.mrb[0].mxu0
        %977 = vmatprep.mubr.f32.mxu0 0.0
        %978 = vmatmul.mubr.f32.gmra.mrb[0].mxu0 %v860
        %v979 = vpop.f32.mrb[0].mxu0
        %v980 = vadd.f32 0.0, %v979
        %v981 = vpop.f32.mrb[0].mxu0
        %982 = vmatprep.mubr.f32.mxu0 0.0
        %983 = vmatmul.mubr.f32.gmra.mrb[0].mxu0 %v863
        %v984 = vpop.f32.mrb[0].mxu0
        %v985 = vadd.f32 0.0, %v984
        %v986 = vpop.f32.mrb[0].mxu0
        %987 = vmatprep.mubr.f32.mxu0 0.0
        %988 = vmatmul.mubr.f32.gmra.mrb[0].mxu0 %v866
        %v989 = vpop.f32.mrb[0].mxu0
        %v990 = vadd.f32 0.0, %v989
        %v991 = vpop.f32.mrb[0].mxu0
        %992 = vdwg.mxu0
        %v993 = vld [vmem:[%s6] sm:$0xff]
        %v994 = vld [vmem:[%s6 + $0x8] sm:$0xff]
        %v995 = vld [vmem:[%s6 + $0x10] sm:$0xff]
        %v996 = vld [vmem:[%s6 + $0x18] sm:$0xff]
        %v997 = vld [vmem:[%s6 + $0x20] sm:$0xff]
        %v998 = vld [vmem:[%s6 + $0x28] sm:$0xff]
        %v999 = vld [vmem:[%s6 + $0x30] sm:$0xff]
        %v1000 = vld [vmem:[%s6 + $0x38] sm:$0xff]
        %v1001 = vld [vmem:[%s5] sm:$0xff]
        %v1002 = vld [vmem:[%s5 + $0x8] sm:$0xff]
        %v1003 = vld [vmem:[%s5 + $0x10] sm:$0xff]
        %v1004 = vld [vmem:[%s5 + $0x18] sm:$0xff]
        %v1005 = vld [vmem:[%s5 + $0x20] sm:$0xff]
        %v1006 = vld [vmem:[%s5 + $0x28] sm:$0xff]
        %v1007 = vld [vmem:[%s5 + $0x30] sm:$0xff]
        %v1008 = vld [vmem:[%s5 + $0x38] sm:$0xff]
        %v1009 = vld [vmem:[%s5 + $0x40] sm:$0xff]
        %v1010 = vld [vmem:[%s5 + $0x48] sm:$0xff]
        %v1011 = vld [vmem:[%s5 + $0x50] sm:$0xff]
        %v1012 = vld [vmem:[%s5 + $0x58] sm:$0xff]
        %v1013 = vld [vmem:[%s5 + $0x60] sm:$0xff]
        %v1014 = vld [vmem:[%s5 + $0x68] sm:$0xff]
        %v1015 = vld [vmem:[%s5 + $0x70] sm:$0xff]
        %v1016 = vld [vmem:[%s5 + $0x78] sm:$0xff]
        %v1017 = vld [vmem:[%s5 + $0x80] sm:$0xff]
        %v1018 = vld [vmem:[%s5 + $0x88] sm:$0xff]
        %v1019 = vld [vmem:[%s5 + $0x90] sm:$0xff]
        %v1020 = vld [vmem:[%s5 + $0x98] sm:$0xff]
        %v1021 = vld [vmem:[%s5 + $0xa0] sm:$0xff]
        %v1022 = vld [vmem:[%s5 + $0xa8] sm:$0xff]
        %v1023 = vld [vmem:[%s5 + $0xb0] sm:$0xff]
        %v1024 = vld [vmem:[%s5 + $0xb8] sm:$0xff]
        %v1025 = vld [vmem:[%s5 + $0xc0] sm:$0xff]
        %v1026 = vld [vmem:[%s5 + $0xc8] sm:$0xff]
        %v1027 = vld [vmem:[%s5 + $0xd0] sm:$0xff]
        %v1028 = vld [vmem:[%s5 + $0xd8] sm:$0xff]
        %v1029 = vld [vmem:[%s5 + $0xe0] sm:$0xff]
        %v1030 = vld [vmem:[%s5 + $0xe8] sm:$0xff]
        %v1031 = vld [vmem:[%s5 + $0xf0] sm:$0xff]
        %v1032 = vld [vmem:[%s5 + $0xf8] sm:$0xff]
        %1033 = vmatprep.subr.mxu0 %v1002
        %1034 = vmatpush1.msra.mxu0 %v1001
        %1035 = vmatprep.subr.mxu0 %v1004
        %1036 = vmatpush1.msra.mxu0 %v1003
        %1037 = vmatprep.subr.mxu0 %v1006
        %1038 = vmatpush1.msra.mxu0 %v1005
        %1039 = vmatprep.subr.mxu0 %v1008
        %1040 = vmatpush1.msra.mxu0 %v1007
        %1041 = vmatprep.subr.mxu0 %v1010
        %1042 = vmatpush1.msra.mxu0 %v1009
        %1043 = vmatprep.subr.mxu0 %v1012
        %1044 = vmatpush1.msra.mxu0 %v1011
        %1045 = vmatprep.subr.mxu0 %v1014
        %1046 = vmatpush1.msra.mxu0 %v1013
        %1047 = vmatprep.subr.mxu0 %v1016
        %1048 = vmatpush1.msra.mxu0 %v1015
        %1049 = vmatprep.subr.mxu0 %v1018
        %1050 = vmatpush1.msra.mxu0 %v1017
        %1051 = vmatprep.subr.mxu0 %v1020
        %1052 = vmatpush1.msra.mxu0 %v1019
        %1053 = vmatprep.subr.mxu0 %v1022
        %1054 = vmatpush1.msra.mxu0 %v1021
        %1055 = vmatprep.subr.mxu0 %v1024
        %1056 = vmatpush1.msra.mxu0 %v1023
        %1057 = vmatprep.subr.mxu0 %v1026
        %1058 = vmatpush1.msra.mxu0 %v1025
        %1059 = vmatprep.subr.mxu0 %v1028
        %1060 = vmatpush1.msra.mxu0 %v1027
        %1061 = vmatprep.subr.mxu0 %v1030
        %1062 = vmatpush1.msra.mxu0 %v1029
        %1063 = vmatprep.subr.mxu0 %v1032
        %1064 = vmatpush1.msra.mxu0 %v1031
        %1065 = vmatprep.subr.mxu0 0.0
        %1066 = vmatpush1.msra.mxu0 0.0
        %1067 = vmatprep.subr.mxu0 0.0
        %1068 = vmatpush1.msra.mxu0 0.0
        %1069 = vmatprep.subr.mxu0 0.0
        %1070 = vmatpush1.msra.mxu0 0.0
        %1071 = vmatprep.subr.mxu0 0.0
        %1072 = vmatpush1.msra.mxu0 0.0
        %1073 = vmatprep.subr.mxu0 0.0
        %1074 = vmatpush1.msra.mxu0 0.0
        %1075 = vmatprep.subr.mxu0 0.0
        %1076 = vmatpush1.msra.mxu0 0.0
        %1077 = vmatprep.subr.mxu0 0.0
        %1078 = vmatpush1.msra.mxu0 0.0
        %1079 = vmatprep.subr.mxu0 0.0
        %1080 = vmatpush1.msra.mxu0 0.0
        %1081 = vmatprep.subr.mxu0 0.0
        %1082 = vmatpush1.msra.mxu0 0.0
        %1083 = vmatprep.subr.mxu0 0.0
        %1084 = vmatpush1.msra.mxu0 0.0
        %1085 = vmatprep.subr.mxu0 0.0
        %1086 = vmatpush1.msra.mxu0 0.0
        %1087 = vmatprep.subr.mxu0 0.0
        %1088 = vmatpush1.msra.mxu0 0.0
        %1089 = vmatprep.subr.mxu0 0.0
        %1090 = vmatpush1.msra.mxu0 0.0
        %1091 = vmatprep.subr.mxu0 0.0
        %1092 = vmatpush1.msra.mxu0 0.0
        %1093 = vmatprep.subr.mxu0 0.0
        %1094 = vmatpush1.msra.mxu0 0.0
        %1095 = vmatprep.subr.mxu0 0.0
        %1096 = vmatpush1.msra.mxu0 0.0
        %1097 = vmatprep.mubr.f32.mxu0 0.0
        %1098 = vmatmul.mubr.f32.gmra.mrb[0].mxu0 %v935
        %v1099 = vpop.f32.mrb[0].mxu0
        %v1100 = vadd.f32 0.0, %v1099
        %v1101 = vpop.f32.mrb[0].mxu0
        %v1102 = vadd.f32 0.0, %v1101
        %1103 = vmatprep.mubr.f32.mxu0 0.0
        %1104 = vmatmul.mubr.f32.gmra.mrb[0].mxu0 %v940
        %v1105 = vpop.f32.mrb[0].mxu0
        %v1106 = vadd.f32 0.0, %v1105
        %v1107 = vpop.f32.mrb[0].mxu0
        %v1108 = vadd.f32 0.0, %v1107
        %1109 = vmatprep.mubr.f32.mxu0 0.0
        %1110 = vmatmul.mubr.f32.gmra.mrb[0].mxu0 %v945
        %v1111 = vpop.f32.mrb[0].mxu0
        %v1112 = vadd.f32 0.0, %v1111
        %v1113 = vpop.f32.mrb[0].mxu0
        %v1114 = vadd.f32 0.0, %v1113
        %1115 = vmatprep.mubr.f32.mxu0 0.0
        %1116 = vmatmul.mubr.f32.gmra.mrb[0].mxu0 %v950
        %v1117 = vpop.f32.mrb[0].mxu0
        %v1118 = vadd.f32 0.0, %v1117
        %v1119 = vpop.f32.mrb[0].mxu0
        %v1120 = vadd.f32 0.0, %v1119
        %1121 = vdwg.mxu0
        %v1122 = vadd.f32 %v993, %v1100
        %v1123 = vadd.f32 %v994, %v1102
        %v1124 = vadd.f32 %v995, %v1106
        %v1125 = vadd.f32 %v996, %v1108
        %v1126 = vadd.f32 %v997, %v1112
        %v1127 = vadd.f32 %v998, %v1114
        %v1128 = vadd.f32 %v999, %v1118
        %v1129 = vadd.f32 %v1000, %v1120
        %s1130 = scalar_lea.vmem %s5, 256
        %v1131 = vld [vmem:[%s1130] sm:$0xff]
        %v1132 = vld [vmem:[%s1130 + $0x8] sm:$0xff]
        %v1133 = vld [vmem:[%s1130 + $0x10] sm:$0xff]
        %v1134 = vld [vmem:[%s1130 + $0x18] sm:$0xff]
        %v1135 = vld [vmem:[%s1130 + $0x20] sm:$0xff]
        %v1136 = vld [vmem:[%s1130 + $0x28] sm:$0xff]
        %v1137 = vld [vmem:[%s1130 + $0x30] sm:$0xff]
        %v1138 = vld [vmem:[%s1130 + $0x38] sm:$0xff]
        %v1139 = vld [vmem:[%s1130 + $0x40] sm:$0xff]
        %v1140 = vld [vmem:[%s1130 + $0x48] sm:$0xff]
        %v1141 = vld [vmem:[%s1130 + $0x50] sm:$0xff]
        %v1142 = vld [vmem:[%s1130 + $0x58] sm:$0xff]
        %v1143 = vld [vmem:[%s1130 + $0x60] sm:$0xff]
        %v1144 = vld [vmem:[%s1130 + $0x68] sm:$0xff]
        %v1145 = vld [vmem:[%s1130 + $0x70] sm:$0xff]
        %v1146 = vld [vmem:[%s1130 + $0x78] sm:$0xff]
        %v1147 = vld [vmem:[%s1130 + $0x80] sm:$0xff]
        %v1148 = vld [vmem:[%s1130 + $0x88] sm:$0xff]
        %v1149 = vld [vmem:[%s1130 + $0x90] sm:$0xff]
        %v1150 = vld [vmem:[%s1130 + $0x98] sm:$0xff]
        %v1151 = vld [vmem:[%s1130 + $0xa0] sm:$0xff]
        %v1152 = vld [vmem:[%s1130 + $0xa8] sm:$0xff]
        %v1153 = vld [vmem:[%s1130 + $0xb0] sm:$0xff]
        %v1154 = vld [vmem:[%s1130 + $0xb8] sm:$0xff]
        %v1155 = vld [vmem:[%s1130 + $0xc0] sm:$0xff]
        %v1156 = vld [vmem:[%s1130 + $0xc8] sm:$0xff]
        %v1157 = vld [vmem:[%s1130 + $0xd0] sm:$0xff]
        %v1158 = vld [vmem:[%s1130 + $0xd8] sm:$0xff]
        %v1159 = vld [vmem:[%s1130 + $0xe0] sm:$0xff]
        %v1160 = vld [vmem:[%s1130 + $0xe8] sm:$0xff]
        %v1161 = vld [vmem:[%s1130 + $0xf0] sm:$0xff]
        %v1162 = vld [vmem:[%s1130 + $0xf8] sm:$0xff]
        %1163 = vmatprep.subr.mxu0 %v1132
        %1164 = vmatpush1.msra.mxu0 %v1131
        %1165 = vmatprep.subr.mxu0 %v1134
        %1166 = vmatpush1.msra.mxu0 %v1133
        %1167 = vmatprep.subr.mxu0 %v1136
        %1168 = vmatpush1.msra.mxu0 %v1135
        %1169 = vmatprep.subr.mxu0 %v1138
        %1170 = vmatpush1.msra.mxu0 %v1137
        %1171 = vmatprep.subr.mxu0 %v1140
        %1172 = vmatpush1.msra.mxu0 %v1139
        %1173 = vmatprep.subr.mxu0 %v1142
        %1174 = vmatpush1.msra.mxu0 %v1141
        %1175 = vmatprep.subr.mxu0 %v1144
        %1176 = vmatpush1.msra.mxu0 %v1143
        %1177 = vmatprep.subr.mxu0 %v1146
        %1178 = vmatpush1.msra.mxu0 %v1145
        %1179 = vmatprep.subr.mxu0 %v1148
        %1180 = vmatpush1.msra.mxu0 %v1147
        %1181 = vmatprep.subr.mxu0 %v1150
        %1182 = vmatpush1.msra.mxu0 %v1149
        %1183 = vmatprep.subr.mxu0 %v1152
        %1184 = vmatpush1.msra.mxu0 %v1151
        %1185 = vmatprep.subr.mxu0 %v1154
        %1186 = vmatpush1.msra.mxu0 %v1153
        %1187 = vmatprep.subr.mxu0 %v1156
        %1188 = vmatpush1.msra.mxu0 %v1155
        %1189 = vmatprep.subr.mxu0 %v1158
        %1190 = vmatpush1.msra.mxu0 %v1157
        %1191 = vmatprep.subr.mxu0 %v1160
        %1192 = vmatpush1.msra.mxu0 %v1159
        %1193 = vmatprep.subr.mxu0 %v1162
        %1194 = vmatpush1.msra.mxu0 %v1161
        %1195 = vmatprep.subr.mxu0 0.0
        %1196 = vmatpush1.msra.mxu0 0.0
        %1197 = vmatprep.subr.mxu0 0.0
        %1198 = vmatpush1.msra.mxu0 0.0
        %1199 = vmatprep.subr.mxu0 0.0
        %1200 = vmatpush1.msra.mxu0 0.0
        %1201 = vmatprep.subr.mxu0 0.0
        %1202 = vmatpush1.msra.mxu0 0.0
        %1203 = vmatprep.subr.mxu0 0.0
        %1204 = vmatpush1.msra.mxu0 0.0
        %1205 = vmatprep.subr.mxu0 0.0
        %1206 = vmatpush1.msra.mxu0 0.0
        %1207 = vmatprep.subr.mxu0 0.0
        %1208 = vmatpush1.msra.mxu0 0.0
        %1209 = vmatprep.subr.mxu0 0.0
        %1210 = vmatpush1.msra.mxu0 0.0
        %1211 = vmatprep.subr.mxu0 0.0
        %1212 = vmatpush1.msra.mxu0 0.0
        %1213 = vmatprep.subr.mxu0 0.0
        %1214 = vmatpush1.msra.mxu0 0.0
        %1215 = vmatprep.subr.mxu0 0.0
        %1216 = vmatpush1.msra.mxu0 0.0
        %1217 = vmatprep.subr.mxu0 0.0
        %1218 = vmatpush1.msra.mxu0 0.0
        %1219 = vmatprep.subr.mxu0 0.0
        %1220 = vmatpush1.msra.mxu0 0.0
        %1221 = vmatprep.subr.mxu0 0.0
        %1222 = vmatpush1.msra.mxu0 0.0
        %1223 = vmatprep.subr.mxu0 0.0
        %1224 = vmatpush1.msra.mxu0 0.0
        %1225 = vmatprep.subr.mxu0 0.0
        %1226 = vmatpush1.msra.mxu0 0.0
        %1227 = vmatprep.mubr.f32.mxu0 0.0
        %1228 = vmatmul.mubr.f32.gmra.mrb[0].mxu0 %v955
        %v1229 = vpop.f32.mrb[0].mxu0
        %v1230 = vadd.f32 0.0, %v1229
        %v1231 = vpop.f32.mrb[0].mxu0
        %v1232 = vadd.f32 0.0, %v1231
        %1233 = vmatprep.mubr.f32.mxu0 0.0
        %1234 = vmatmul.mubr.f32.gmra.mrb[0].mxu0 %v960
        %v1235 = vpop.f32.mrb[0].mxu0
        %v1236 = vadd.f32 0.0, %v1235
        %v1237 = vpop.f32.mrb[0].mxu0
        %v1238 = vadd.f32 0.0, %v1237
        %1239 = vmatprep.mubr.f32.mxu0 0.0
        %1240 = vmatmul.mubr.f32.gmra.mrb[0].mxu0 %v965
        %v1241 = vpop.f32.mrb[0].mxu0
        %v1242 = vadd.f32 0.0, %v1241
        %v1243 = vpop.f32.mrb[0].mxu0
        %v1244 = vadd.f32 0.0, %v1243
        %1245 = vmatprep.mubr.f32.mxu0 0.0
        %1246 = vmatmul.mubr.f32.gmra.mrb[0].mxu0 %v970
        %v1247 = vpop.f32.mrb[0].mxu0
        %v1248 = vadd.f32 0.0, %v1247
        %v1249 = vpop.f32.mrb[0].mxu0
        %v1250 = vadd.f32 0.0, %v1249
        %1251 = vdwg.mxu0
        %v1252 = vadd.f32 %v1122, %v1230
        %v1253 = vadd.f32 %v1123, %v1232
        %v1254 = vadd.f32 %v1124, %v1236
        %v1255 = vadd.f32 %v1125, %v1238
        %v1256 = vadd.f32 %v1126, %v1242
        %v1257 = vadd.f32 %v1127, %v1244
        %v1258 = vadd.f32 %v1128, %v1248
        %v1259 = vadd.f32 %v1129, %v1250
        %s1260 = scalar_lea.vmem %s5, 512
        %v1261 = vld [vmem:[%s1260] sm:$0xff]
        %v1262 = vld [vmem:[%s1260 + $0x8] sm:$0xff]
        %v1263 = vld [vmem:[%s1260 + $0x10] sm:$0xff]
        %v1264 = vld [vmem:[%s1260 + $0x18] sm:$0xff]
        %v1265 = vld [vmem:[%s1260 + $0x20] sm:$0xff]
        %v1266 = vld [vmem:[%s1260 + $0x28] sm:$0xff]
        %v1267 = vld [vmem:[%s1260 + $0x30] sm:$0xff]
        %v1268 = vld [vmem:[%s1260 + $0x38] sm:$0xff]
        %v1269 = vld [vmem:[%s1260 + $0x40] sm:$0xff]
        %v1270 = vld [vmem:[%s1260 + $0x48] sm:$0xff]
        %v1271 = vld [vmem:[%s1260 + $0x50] sm:$0xff]
        %v1272 = vld [vmem:[%s1260 + $0x58] sm:$0xff]
        %v1273 = vld [vmem:[%s1260 + $0x60] sm:$0xff]
        %v1274 = vld [vmem:[%s1260 + $0x68] sm:$0xff]
        %v1275 = vld [vmem:[%s1260 + $0x70] sm:$0xff]
        %v1276 = vld [vmem:[%s1260 + $0x78] sm:$0xff]
        %v1277 = vld [vmem:[%s1260 + $0x80] sm:$0xff]
        %v1278 = vld [vmem:[%s1260 + $0x88] sm:$0xff]
        %v1279 = vld [vmem:[%s1260 + $0x90] sm:$0xff]
        %v1280 = vld [vmem:[%s1260 + $0x98] sm:$0xff]
        %v1281 = vld [vmem:[%s1260 + $0xa0] sm:$0xff]
        %v1282 = vld [vmem:[%s1260 + $0xa8] sm:$0xff]
        %v1283 = vld [vmem:[%s1260 + $0xb0] sm:$0xff]
        %v1284 = vld [vmem:[%s1260 + $0xb8] sm:$0xff]
        %v1285 = vld [vmem:[%s1260 + $0xc0] sm:$0xff]
        %v1286 = vld [vmem:[%s1260 + $0xc8] sm:$0xff]
        %v1287 = vld [vmem:[%s1260 + $0xd0] sm:$0xff]
        %v1288 = vld [vmem:[%s1260 + $0xd8] sm:$0xff]
        %v1289 = vld [vmem:[%s1260 + $0xe0] sm:$0xff]
        %v1290 = vld [vmem:[%s1260 + $0xe8] sm:$0xff]
        %v1291 = vld [vmem:[%s1260 + $0xf0] sm:$0xff]
        %v1292 = vld [vmem:[%s1260 + $0xf8] sm:$0xff]
        %1293 = vmatprep.subr.mxu0 %v1262
        %1294 = vmatpush1.msra.mxu0 %v1261
        %1295 = vmatprep.subr.mxu0 %v1264
        %1296 = vmatpush1.msra.mxu0 %v1263
        %1297 = vmatprep.subr.mxu0 %v1266
        %1298 = vmatpush1.msra.mxu0 %v1265
        %1299 = vmatprep.subr.mxu0 %v1268
        %1300 = vmatpush1.msra.mxu0 %v1267
        %1301 = vmatprep.subr.mxu0 %v1270
        %1302 = vmatpush1.msra.mxu0 %v1269
        %1303 = vmatprep.subr.mxu0 %v1272
        %1304 = vmatpush1.msra.mxu0 %v1271
        %1305 = vmatprep.subr.mxu0 %v1274
        %1306 = vmatpush1.msra.mxu0 %v1273
        %1307 = vmatprep.subr.mxu0 %v1276
        %1308 = vmatpush1.msra.mxu0 %v1275
        %1309 = vmatprep.subr.mxu0 %v1278
        %1310 = vmatpush1.msra.mxu0 %v1277
        %1311 = vmatprep.subr.mxu0 %v1280
        %1312 = vmatpush1.msra.mxu0 %v1279
        %1313 = vmatprep.subr.mxu0 %v1282
        %1314 = vmatpush1.msra.mxu0 %v1281
        %1315 = vmatprep.subr.mxu0 %v1284
        %1316 = vmatpush1.msra.mxu0 %v1283
        %1317 = vmatprep.subr.mxu0 %v1286
        %1318 = vmatpush1.msra.mxu0 %v1285
        %1319 = vmatprep.subr.mxu0 %v1288
        %1320 = vmatpush1.msra.mxu0 %v1287
        %1321 = vmatprep.subr.mxu0 %v1290
        %1322 = vmatpush1.msra.mxu0 %v1289
        %1323 = vmatprep.subr.mxu0 %v1292
        %1324 = vmatpush1.msra.mxu0 %v1291
        %1325 = vmatprep.subr.mxu0 0.0
        %1326 = vmatpush1.msra.mxu0 0.0
        %1327 = vmatprep.subr.mxu0 0.0
        %1328 = vmatpush1.msra.mxu0 0.0
        %1329 = vmatprep.subr.mxu0 0.0
        %1330 = vmatpush1.msra.mxu0 0.0
        %1331 = vmatprep.subr.mxu0 0.0
        %1332 = vmatpush1.msra.mxu0 0.0
        %1333 = vmatprep.subr.mxu0 0.0
        %1334 = vmatpush1.msra.mxu0 0.0
        %1335 = vmatprep.subr.mxu0 0.0
        %1336 = vmatpush1.msra.mxu0 0.0
        %1337 = vmatprep.subr.mxu0 0.0
        %1338 = vmatpush1.msra.mxu0 0.0
        %1339 = vmatprep.subr.mxu0 0.0
        %1340 = vmatpush1.msra.mxu0 0.0
        %1341 = vmatprep.subr.mxu0 0.0
        %1342 = vmatpush1.msra.mxu0 0.0
        %1343 = vmatprep.subr.mxu0 0.0
        %1344 = vmatpush1.msra.mxu0 0.0
        %1345 = vmatprep.subr.mxu0 0.0
        %1346 = vmatpush1.msra.mxu0 0.0
        %1347 = vmatprep.subr.mxu0 0.0
        %1348 = vmatpush1.msra.mxu0 0.0
        %1349 = vmatprep.subr.mxu0 0.0
        %1350 = vmatpush1.msra.mxu0 0.0
        %1351 = vmatprep.subr.mxu0 0.0
        %1352 = vmatpush1.msra.mxu0 0.0
        %1353 = vmatprep.subr.mxu0 0.0
        %1354 = vmatpush1.msra.mxu0 0.0
        %1355 = vmatprep.subr.mxu0 0.0
        %1356 = vmatpush1.msra.mxu0 0.0
        %1357 = vmatprep.mubr.f32.mxu0 0.0
        %1358 = vmatmul.mubr.f32.gmra.mrb[0].mxu0 %v975
        %v1359 = vpop.f32.mrb[0].mxu0
        %v1360 = vadd.f32 0.0, %v1359
        %v1361 = vpop.f32.mrb[0].mxu0
        %v1362 = vadd.f32 0.0, %v1361
        %1363 = vmatprep.mubr.f32.mxu0 0.0
        %1364 = vmatmul.mubr.f32.gmra.mrb[0].mxu0 %v980
        %v1365 = vpop.f32.mrb[0].mxu0
        %v1366 = vadd.f32 0.0, %v1365
        %v1367 = vpop.f32.mrb[0].mxu0
        %v1368 = vadd.f32 0.0, %v1367
        %1369 = vmatprep.mubr.f32.mxu0 0.0
        %1370 = vmatmul.mubr.f32.gmra.mrb[0].mxu0 %v985
        %v1371 = vpop.f32.mrb[0].mxu0
        %v1372 = vadd.f32 0.0, %v1371
        %v1373 = vpop.f32.mrb[0].mxu0
        %v1374 = vadd.f32 0.0, %v1373
        %1375 = vmatprep.mubr.f32.mxu0 0.0
        %1376 = vmatmul.mubr.f32.gmra.mrb[0].mxu0 %v990
        %v1377 = vpop.f32.mrb[0].mxu0
        %v1378 = vadd.f32 0.0, %v1377
        %v1379 = vpop.f32.mrb[0].mxu0
        %v1380 = vadd.f32 0.0, %v1379
        %1381 = vdwg.mxu0
        %v1382 = vadd.f32 %v1252, %v1360
        %v1383 = vadd.f32 %v1253, %v1362
        %v1384 = vadd.f32 %v1254, %v1366
        %v1385 = vadd.f32 %v1255, %v1368
        %v1386 = vadd.f32 %v1256, %v1372
        %v1387 = vadd.f32 %v1257, %v1374
        %v1388 = vadd.f32 %v1258, %v1378
        %v1389 = vadd.f32 %v1259, %v1380
        %v1390 = vmul.f32 %v1382, 0.5
        %v1391 = vmul.f32 %v1383, 0.5
        %v1392 = vmul.f32 %v1384, 0.5
        %v1393 = vmul.f32 %v1385, 0.5
        %v1394 = vmul.f32 %v1386, 0.5
        %v1395 = vmul.f32 %v1387, 0.5
        %v1396 = vmul.f32 %v1388, 0.5
        %v1397 = vmul.f32 %v1389, 0.5
        %v1398 = vtanh.pop %v1390
        %v1399 = vtanh.pop %v1391
        %v1400 = vtanh.pop %v1392
        %v1401 = vtanh.pop %v1393
        %v1402 = vtanh.pop %v1394
        %v1403 = vtanh.pop %v1395
        %v1404 = vtanh.pop %v1396
        %v1405 = vtanh.pop %v1397
        %v1406 = vadd.f32 %v1398, 1.0
        %v1407 = vadd.f32 %v1399, 1.0
        %v1408 = vadd.f32 %v1400, 1.0
        %v1409 = vadd.f32 %v1401, 1.0
        %v1410 = vadd.f32 %v1402, 1.0
        %v1411 = vadd.f32 %v1403, 1.0
        %v1412 = vadd.f32 %v1404, 1.0
        %v1413 = vadd.f32 %v1405, 1.0
        %v1414 = vmul.f32 %v1406, 0.5
        %v1415 = vmul.f32 %v1407, 0.5
        %v1416 = vmul.f32 %v1408, 0.5
        %v1417 = vmul.f32 %v1409, 0.5
        %v1418 = vmul.f32 %v1410, 0.5
        %v1419 = vmul.f32 %v1411, 0.5
        %v1420 = vmul.f32 %v1412, 0.5
        %v1421 = vmul.f32 %v1413, 0.5
        %1422 = vst [vmem:[%s305] sm:$0xff] %v1414
        %vm1423 = vcmask 261120
        %1424 = vst.msk [vmem:[%s305 + $0x8] sm:$0xff] %vm1423, %v1415
        %1425 = vst [vmem:[%s305 + $0x10] sm:$0xff] %v1416
        %1426 = vst.msk [vmem:[%s305 + $0x18] sm:$0xff] %vm1423, %v1417
        %1427 = vst [vmem:[%s305 + $0x20] sm:$0xff] %v1418
        %1428 = vst.msk [vmem:[%s305 + $0x28] sm:$0xff] %vm1423, %v1419
        %1429 = vst [vmem:[%s305 + $0x30] sm:$0xff] %v1420
        %1430 = vst.msk [vmem:[%s305 + $0x38] sm:$0xff] %vm1423, %v1421
        %p1431 = scmp.lt.s32.totalorder %s18, 1
        %s1432 = scalar_select %p1431, %s18, 1
        %s1433 = smul.addr %s1432, 8
        %s1434 = smul.addr %s1433, 8
        %s1435 = scalar_lea.vmem %s7, %s1434
        // Predicated region
        $region72: #{_forward_jit.1} parent=66 // pred_check
          %p1436 = pneg %p188
        $region73: #{_forward_jit.1} parent=66 // pred_check_branch
          %1438 = sbr.rel (%p1436) target = $region75
        $region74: #{_forward_jit.1} parent=66 // pred_region
          _
        $region75: #{_forward_jit.1} parent=66 // pred_fallthru
          _
      $region67: #{_forward_jit.1} parent=5 // pred_fallthru
        _
      %p1439 = scmp.le.s32.totalorder 2, %s13
      // Predicated region
      $region76: #{_forward_jit.1} parent=5 // pred_check
        %p1440 = pneg %p1439
      $region77: #{_forward_jit.1} parent=5 // pred_check_branch
        %1442 = sbr.rel (%p1440) target = $region79
      $region78: #{_forward_jit.1} parent=5 // pred_region
        %s1443 = ssub.s32 %s13, 2
        // Predicated region
        $region80: #{_forward_jit.1} parent=78 // pred_check
          %p1444 = pneg %p194
        $region81: #{_forward_jit.1} parent=78 // pred_check_branch
          %1446 = sbr.rel (%p1444) target = $region83
        $region82: #{_forward_jit.1} parent=78 // pred_region
          %p1447 = scmp.lt.s32.totalorder %s19, 1
          %s1448 = scalar_select %p1447, %s19, 1
          %s1449 = smul.addr %s1448, 8
          %s1450 = smul.addr %s1449, 8
          %s1451 = scalar_lea.vmem %s7, %s1450
        $region83: #{_forward_jit.1} parent=78 // pred_fallthru
          _
      $region79: #{_forward_jit.1} parent=5 // pred_fallthru
        _
    $region6: #{_forward_jit.1} parent=1 // loop_footer
      %s17 = sadd.s32 1, %s13
    $region7: #{_forward_jit.1} parent=1 // loop_footer_branch
      %12 = sbr.rel target = $region3
    $region8: #{_forward_jit.1} parent=1 // loop_exit
      _

</llo_original>
